<compile_context>
chip_gen: v5e
topology: v5e:2x2
jax: 0.10.0
libtpu: 0.0.40
codegen_flags: <defaults>
</compile_context>

<pallas_src>
import jax
import jax.numpy as jnp
from jax.experimental import pallas as pl
from jax.experimental.pallas import tpu as pltpu


def _round_up(x, m):
    return (x + m - 1) // m * m


# ---------------------------------------------------------------------------
# Pallas kernel: whole sequence in one invocation.
#   1) one big MXU matmul for the input projection of all timesteps,
#   2) serial fori_loop (bounded by max(lengths)) doing h @ W_hh + gate math
#      with the hidden state resident in the loop carry (vregs).
# ---------------------------------------------------------------------------
def gru_seq_kernel(maxlen_ref,                  # scalar prefetch (SMEM): (1,) int32
                   len_ref, x_ref, wih_ref, whh_ref, bgi_ref, bhn_ref,  # inputs
                   out_ref,                     # output (B_pad, H_pad) f32
                   gi_ref):                     # VMEM scratch (T*B_pad, 3*H_pad) f32
    Bp, Hp = out_ref.shape

    # --- 1) Hoisted input projection for ALL timesteps (single MXU matmul). ---
    # bgi = b_ih + [b_hr | b_hz | 0]  (r/z thirds of b_hh folded in on the host).
    gi_ref[...] = (
        jnp.dot(x_ref[...], wih_ref[...], preferred_element_type=jnp.float32)
        + bgi_ref[...]
    )

    lengths = len_ref[...]                                 # (Bp, 1) int32, loaded once
    bhn = jnp.broadcast_to(bhn_ref[...], (Bp, Hp))         # hoisted: no per-step bcast

    h0 = jnp.zeros((Bp, Hp), jnp.float32)
    carry0 = (h0, h0.astype(jnp.bfloat16))

    # --- 2) Serial recurrence: only W_hh streaming + gate math per step. ---
    def step(t, carry):
        h_prev, h_prev_b = carry
        gh = jnp.dot(h_prev_b, whh_ref[...], preferred_element_type=jnp.float32)
        row = pl.multiple_of(t * Bp, Bp)                   # sublane-aligned dyn slice
        gi_t = gi_ref[pl.ds(row, Bp), :]                   # (Bp, 3*Hp) f32

        # Gate-major layout [r | z | n], each Hp (128-aligned) wide.
        r = jax.nn.sigmoid(gi_t[:, :Hp] + gh[:, :Hp])
        z = jax.nn.sigmoid(gi_t[:, Hp:2 * Hp] + gh[:, Hp:2 * Hp])
        n = jnp.tanh(gi_t[:, 2 * Hp:] + r * (gh[:, 2 * Hp:] + bhn))
        h_new = (1.0 - z) * n + z * h_prev

        # pack_padded_sequence semantics: freeze h once t >= length.
        h = jnp.where(t < lengths, h_new, h_prev)
        return (h, h.astype(jnp.bfloat16))

    h_final, _ = jax.lax.fori_loop(0, maxlen_ref[0], step, carry0)

    # One final lane-dense store of the hidden state.
    out_ref[...] = h_final


def gru_last_hidden(x, lengths, params):
    """x: (B, T, D) float32, lengths: (B,) int32 -> (B, H) float32."""
    B, T, D = x.shape
    wih, whh, bih, bhh = params                # (D,3H), (H,3H), (1,3H), (1,3H) f32
    H = whh.shape[0]

    Bp = _round_up(B, 8)                       # sublane multiple
    Dp = _round_up(D, 128)                     # lane multiple
    Hp = _round_up(H, 128)                     # lane multiple (gate slice boundary)

    def pad_gates(w, rows, rows_pad):
        # (rows, 3H) -> gate-major padded (rows_pad, 3*Hp); zero padding is inert
        # for the real lanes (padded h lanes stay exactly 0 through the recurrence).
        w3 = w.reshape(rows, 3, H)
        w3 = jnp.pad(w3, ((0, rows_pad - rows), (0, 0), (0, Hp - H)))
        return w3.reshape(rows_pad, 3 * Hp)

    wih_p = pad_gates(wih, D, Dp).astype(jnp.bfloat16)   # (D_pad, 3*H_pad)
    whh_p = pad_gates(whh, H, Hp).astype(jnp.bfloat16)   # (H_pad, 3*H_pad)

    # Fold the r/z thirds of b_hh into the hoisted-projection bias; keep b_hn apart
    # (PyTorch applies it inside r * (W_hn h + b_hn)).
    bih3 = bih.reshape(3, H)
    bhh3 = bhh.reshape(3, H)
    bgi3 = jnp.concatenate([bih3[:2] + bhh3[:2], bih3[2:3]], axis=0)       # (3, H)
    bgi_p = jnp.pad(bgi3, ((0, 0), (0, Hp - H))).reshape(1, 3 * Hp)
    bgi_p = bgi_p.astype(jnp.float32)                                      # (1, 3*H_pad)
    bhn_p = jnp.pad(bhh3[2:3], ((0, 0), (0, Hp - H))).astype(jnp.float32)  # (1, H_pad)

    # Time-major, padded, flattened input: rows [t*Bp, (t+1)*Bp) == timestep t.
    x_tm = jnp.transpose(x, (1, 0, 2))                   # (T, B, D)
    x_tm = jnp.pad(x_tm, ((0, 0), (0, Bp - B), (0, Dp - D)))
    x_flat = x_tm.reshape(T * Bp, Dp).astype(jnp.bfloat16)

    len_p = jnp.pad(lengths.astype(jnp.int32), (0, Bp - B)).reshape(Bp, 1)
    max_len = jnp.max(lengths).astype(jnp.int32).reshape(1)   # SMEM scalar

    # VMEM budget derived from actual buffer sizes (+ headroom for Mosaic internal
    # scratch), clamped under v7x's 64 MiB physical VMEM.
    gi_bytes = T * Bp * 3 * Hp * 4
    buf_bytes = (x_flat.size * 2 + wih_p.size * 2 + whh_p.size * 2
                 + bgi_p.size * 4 + bhn_p.size * 4 + len_p.size * 4
                 + gi_bytes + 2 * Bp * Hp * 4)
    vmem_limit = int(min(max(2 * buf_bytes + (4 << 20), 16 << 20), 56 << 20))

    def build(single_buffer):
        # Single-buffer the big grid-invariant inputs: at grid=(1,) default double
        # buffering only doubles the resident footprint of x and both weights.
        extra = {"pipeline_mode": pl.Buffered(1)} if single_buffer else {}
        return pl.pallas_call(
            gru_seq_kernel,
            out_shape=jax.ShapeDtypeStruct((Bp, Hp), jnp.float32),
            grid_spec=pltpu.PrefetchScalarGridSpec(
                num_scalar_prefetch=1,             # max_len -> SMEM, bounds the loop
                grid=(1,),                         # single invocation; loop in-kernel
                in_specs=[
                    pl.BlockSpec((Bp, 1), lambda i, ml: (0, 0)),                # lengths
                    pl.BlockSpec((T * Bp, Dp), lambda i, ml: (0, 0), **extra),  # x
                    pl.BlockSpec((Dp, 3 * Hp), lambda i, ml: (0, 0), **extra),  # W_ih^T
                    pl.BlockSpec((Hp, 3 * Hp), lambda i, ml: (0, 0), **extra),  # W_hh^T
                    pl.BlockSpec((1, 3 * Hp), lambda i, ml: (0, 0)),            # b_gi
                    pl.BlockSpec((1, Hp), lambda i, ml: (0, 0)),                # b_hn
                ],
                out_specs=pl.BlockSpec((Bp, Hp), lambda i, ml: (0, 0)),
                scratch_shapes=[
                    pltpu.VMEM((T * Bp, 3 * Hp), jnp.float32),  # hoisted projection
                ],
            ),
            compiler_params=pltpu.CompilerParams(
                dimension_semantics=("arbitrary",),
                vmem_limit_bytes=vmem_limit,
            ),
        )

    args = (max_len, len_p, x_flat, wih_p, whh_p, bgi_p, bhn_p)
    try:
        out = build(True)(*args)
    except Exception:
        # pipeline_mode single-buffering is a pure VMEM-footprint optimization; fall
        # back to default double-buffering if this Pallas version rejects it.
        out = build(False)(*args)

    return out[:B, :H]


# ---------------------------------------------------------------------------
# LocalModelForURFUNNY: per-client GRU configuration + deterministic params.
# ---------------------------------------------------------------------------
_CLIENT_DIMS = {0: (371, 700), 1: (81, 160), 2: (300, 600)}  # (indim, hiddim)


def make_local_model(client_number, key):
    indim, hiddim = _CLIENT_DIMS.get(client_number, _CLIENT_DIMS[2])
    k = 1.0 / jnp.sqrt(jnp.float32(hiddim))    # PyTorch nn.GRU init range
    k1, k2, k3, k4 = jax.random.split(key, 4)
    # Stored transposed relative to PyTorch ((3H, D) -> (D, 3H)), gates [r|z|n].
    wih = jax.random.uniform(k1, (indim, 3 * hiddim), jnp.float32, -k, k)
    whh = jax.random.uniform(k2, (hiddim, 3 * hiddim), jnp.float32, -k, k)
    bih = jax.random.uniform(k3, (1, 3 * hiddim), jnp.float32, -k, k)
    bhh = jax.random.uniform(k4, (1, 3 * hiddim), jnp.float32, -k, k)
    params = (wih, whh, bih, bhh)

    def forward(x_tuple):
        seq, lengths = x_tuple                 # mirrors has_padding=True input
        return gru_last_hidden(seq, lengths, params)

    return forward, params, (indim, hiddim)


# ---------------------------------------------------------------------------
# Pure-JAX references (lax.scan):
#   * use_bf16=True  -> matches kernel numerics (bf16 matmul operands, f32 acc)
#   * use_bf16=False -> true f32 GRU (PyTorch-equivalent math) at looser tolerance
# ---------------------------------------------------------------------------
def gru_reference(x, lengths, params, use_bf16=True):
    wih, whh, bih, bhh = params
    H = whh.shape[0]
    cast = (lambda a: a.astype(jnp.bfloat16)) if use_bf16 else (lambda a: a)
    wih_c, whh_c = cast(wih), cast(whh)

    def step(h, inp):
        x_t, t = inp
        gi = jnp.dot(cast(x_t), wih_c, preferred_element_type=jnp.float32) + bih
        gh = jnp.dot(cast(h), whh_c, preferred_element_type=jnp.float32) + bhh
        r = jax.nn.sigmoid(gi[:, :H] + gh[:, :H])
        z = jax.nn.sigmoid(gi[:, H:2 * H] + gh[:, H:2 * H])
        n = jnp.tanh(gi[:, 2 * H:] + r * gh[:, 2 * H:])
        h_new = (1.0 - z) * n + z * h
        valid = (t < lengths)[:, None]
        return jnp.where(valid, h_new, h), None

    B, T, _ = x.shape
    h0 = jnp.zeros((B, H), jnp.float32)
    xs = (jnp.transpose(x, (1, 0, 2)), jnp.arange(T, dtype=jnp.int32))
    h_final, _ = jax.lax.scan(step, h0, xs)
    return h_final


if __name__ == "__main__":
    key = jax.random.PRNGKey(0)
    k_model, k_x, k_len = jax.random.split(key, 3)

    client_number = 1                          # audio client: indim=81, hiddim=160
    forward, params, (indim, hiddim) = make_local_model(client_number, k_model)

    B, T = 2, 8
    x = jax.random.normal(k_x, (B, T, indim), jnp.float32)
    lengths = jax.random.randint(k_len, (B,), 1, T + 1, jnp.int32)  # lengths >= 1

    out = forward((x, lengths))
    out = jax.block_until_ready(out)
    assert out.shape == (B, hiddim)

    # Tight check vs a reference with matching (bf16-operand) numerics.
    ref_b = gru_reference(x, lengths, params, use_bf16=True)
    assert jnp.allclose(out, ref_b, atol=2e-3, rtol=2e-3), \
        "mismatch vs matched-numerics JAX reference"

    # Looser check vs a true f32 GRU (PyTorch-equivalent math).
    ref_f = gru_reference(x, lengths, params, use_bf16=False)
    assert jnp.allclose(out, ref_f, atol=2e-2, rtol=2e-2), \
        "mismatch vs f32 JAX reference"

    print("KERNEL_OK")
</pallas_src>

<mosaic_0001>
module attributes {stable_mosaic.version = 11 : i64} {
  func.func @gru_seq_kernel(%arg0: i32, %arg1: memref<1xi32, #tpu.memory_space<smem>>, %arg2: memref<8x1xi32, #tpu.memory_space<vmem>>, %arg3: memref<64x128xbf16, #tpu.memory_space<vmem>>, %arg4: memref<128x768xbf16, #tpu.memory_space<vmem>>, %arg5: memref<256x768xbf16, #tpu.memory_space<vmem>>, %arg6: memref<1x768xf32, #tpu.memory_space<vmem>>, %arg7: memref<1x256xf32, #tpu.memory_space<vmem>>, %arg8: memref<8x256xf32, #tpu.memory_space<vmem>>, %arg9: memref<64x768xf32, #tpu.memory_space<vmem>>) attributes {dimension_semantics = [#tpu.dimension_semantics<arbitrary>], iteration_bounds = array<i64: 1>, scalar_prefetch = 1 : i64, scratch_operands = 1 : i64, tpu.core_type = #tpu.core_type<tc>, window_params = [{pipeline_mode = #tpu.pipeline_mode<synchronous>, transform_indices = @transform_0, window_bounds = array<i64: 8, 1>}, {pipeline_mode = #tpu.pipeline_mode<synchronous>, transform_indices = @transform_1, window_bounds = array<i64: 64, 128>}, {pipeline_mode = #tpu.pipeline_mode<synchronous>, transform_indices = @transform_2, window_bounds = array<i64: 128, 768>}, {pipeline_mode = #tpu.pipeline_mode<synchronous>, transform_indices = @transform_3, window_bounds = array<i64: 256, 768>}, {pipeline_mode = #tpu.pipeline_mode<synchronous>, transform_indices = @transform_4, window_bounds = array<i64: 1, 768>}, {pipeline_mode = #tpu.pipeline_mode<synchronous>, transform_indices = @transform_5, window_bounds = array<i64: 1, 256>}, {pipeline_mode = #tpu.pipeline_mode<synchronous>, transform_indices = @transform_6, window_bounds = array<i64: 8, 256>}]} {
    %c0 = arith.constant 0 : index
    %c0_0 = arith.constant 0 : index
    %0 = vector.load %arg3[%c0, %c0_0] : memref<64x128xbf16, #tpu.memory_space<vmem>>, vector<64x128xbf16>
    %c0_1 = arith.constant 0 : index
    %c0_2 = arith.constant 0 : index
    %1 = vector.load %arg4[%c0_1, %c0_2] : memref<128x768xbf16, #tpu.memory_space<vmem>>, vector<128x768xbf16>
    %cst = arith.constant dense<0.000000e+00> : vector<64x768xf32>
    %2 = tpu.matmul %0, %1, %cst {dimension_numbers = #tpu.dot_dimension_numbers<[1], [0], [0], [1], [0, 0, 1, 1], [], []>} : vector<64x128xbf16>, vector<128x768xbf16>, vector<64x768xf32> -> vector<64x768xf32>
    %c0_3 = arith.constant 0 : index
    %c0_4 = arith.constant 0 : index
    %3 = vector.load %arg6[%c0_3, %c0_4] : memref<1x768xf32, #tpu.memory_space<vmem>>, vector<1x768xf32>
    %4 = vector.broadcast %3 : vector<1x768xf32> to vector<64x768xf32>
    %5 = arith.addf %2, %4 : vector<64x768xf32>
    %c0_5 = arith.constant 0 : index
    %c0_6 = arith.constant 0 : index
    %6 = vector.load %arg9[%c0_5, %c0_6] : memref<64x768xf32, #tpu.memory_space<vmem>>, vector<64x768xf32>
    tpu.vector_store %arg9[%c0_5, %c0_6], %5 {strides = array<i32>} : memref<64x768xf32, #tpu.memory_space<vmem>>, vector<64x768xf32>,
    %c0_7 = arith.constant 0 : index
    %c0_8 = arith.constant 0 : index
    %7 = vector.load %arg2[%c0_7, %c0_8] : memref<8x1xi32, #tpu.memory_space<vmem>>, vector<8x1xi32>
    %c0_9 = arith.constant 0 : index
    %c0_10 = arith.constant 0 : index
    %8 = vector.load %arg7[%c0_9, %c0_10] : memref<1x256xf32, #tpu.memory_space<vmem>>, vector<1x256xf32>
    %9 = vector.shape_cast %8 : vector<1x256xf32> to vector<1x256xf32>
    %10 = vector.broadcast %9 : vector<1x256xf32> to vector<8x256xf32>
    %cst_11 = arith.constant 0.000000e+00 : f32
    %11 = vector.broadcast %cst_11 : f32 to vector<8x256xf32>
    %12 = arith.truncf %11 : vector<8x256xf32> to vector<8x256xbf16>
    %c0_12 = arith.constant 0 : index
    %13 = memref.load %arg1[%c0_12] : memref<1xi32, #tpu.memory_space<smem>>
    %c0_i32 = arith.constant 0 : i32
    %14 = arith.subi %13, %c0_i32 : i32
    %15 = arith.addi %c0_i32, %14 : i32
    %c1_i32 = arith.constant 1 : i32
    %16:2 = scf.for %arg10 = %c0_i32 to %15 step %c1_i32 iter_args(%arg11 = %11, %arg12 = %12) -> (vector<8x256xf32>, vector<8x256xbf16>)  : i32 {
      %c0_15 = arith.constant 0 : index
      %c0_16 = arith.constant 0 : index
      %18 = vector.load %arg5[%c0_15, %c0_16] : memref<256x768xbf16, #tpu.memory_space<vmem>>, vector<256x768xbf16>
      %cst_17 = arith.constant dense<0.000000e+00> : vector<8x768xf32>
      %19 = tpu.matmul %arg12, %18, %cst_17 {dimension_numbers = #tpu.dot_dimension_numbers<[1], [0], [0], [1], [0, 0, 1, 1], [], []>} : vector<8x256xbf16>, vector<256x768xbf16>, vector<8x768xf32> -> vector<8x768xf32>
      %c8_i32 = arith.constant 8 : i32
      %20 = arith.muli %arg10, %c8_i32 : i32
      %21 = tpu.assume_multiple %20, 8 : i32
      %22 = arith.index_cast %21 : i32 to index
      %c0_18 = arith.constant 0 : index
      %23 = vector.load %arg9[%22, %c0_18] : memref<64x768xf32, #tpu.memory_space<vmem>>, vector<8x768xf32>
      %24 = vector.extract_strided_slice %23 {offsets = [0, 0], sizes = [8, 256], strides = [1, 1]} : vector<8x768xf32> to vector<8x256xf32>
      %25 = vector.extract_strided_slice %19 {offsets = [0, 0], sizes = [8, 256], strides = [1, 1]} : vector<8x768xf32> to vector<8x256xf32>
      %26 = arith.addf %24, %25 : vector<8x256xf32>
      %27 = arith.negf %26 : vector<8x256xf32>
      %28 = math.exp %27 : vector<8x256xf32>
      %cst_19 = arith.constant 1.000000e+00 : f32
      %29 = vector.broadcast %cst_19 : f32 to vector<8x256xf32>
      %30 = arith.addf %29, %28 : vector<8x256xf32>
      %31 = arith.divf %29, %30 : vector<8x256xf32>
      %32 = vector.extract_strided_slice %23 {offsets = [0, 256], sizes = [8, 256], strides = [1, 1]} : vector<8x768xf32> to vector<8x256xf32>
      %33 = vector.extract_strided_slice %19 {offsets = [0, 256], sizes = [8, 256], strides = [1, 1]} : vector<8x768xf32> to vector<8x256xf32>
      %34 = arith.addf %32, %33 : vector<8x256xf32>
      %35 = arith.negf %34 : vector<8x256xf32>
      %36 = math.exp %35 : vector<8x256xf32>
      %cst_20 = arith.constant 1.000000e+00 : f32
      %37 = vector.broadcast %cst_20 : f32 to vector<8x256xf32>
      %38 = arith.addf %37, %36 : vector<8x256xf32>
      %39 = arith.divf %37, %38 : vector<8x256xf32>
      %40 = vector.extract_strided_slice %23 {offsets = [0, 512], sizes = [8, 256], strides = [1, 1]} : vector<8x768xf32> to vector<8x256xf32>
      %41 = vector.extract_strided_slice %19 {offsets = [0, 512], sizes = [8, 256], strides = [1, 1]} : vector<8x768xf32> to vector<8x256xf32>
      %42 = arith.addf %41, %10 : vector<8x256xf32>
      %43 = arith.mulf %31, %42 : vector<8x256xf32>
      %44 = arith.addf %40, %43 : vector<8x256xf32>
      %45 = math.tanh %44 : vector<8x256xf32>
      %cst_21 = arith.constant 1.000000e+00 : f32
      %46 = vector.broadcast %cst_21 : f32 to vector<8x256xf32>
      %47 = arith.subf %46, %39 : vector<8x256xf32>
      %48 = arith.mulf %47, %45 : vector<8x256xf32>
      %49 = arith.mulf %39, %arg11 : vector<8x256xf32>
      %50 = arith.addf %48, %49 : vector<8x256xf32>
      %51 = vector.broadcast %arg10 : i32 to vector<8x1xi32>
      %52 = arith.cmpi slt, %51, %7 : vector<8x1xi32>
      %53 = vector.shape_cast %52 : vector<8x1xi1> to vector<8x1xi1>
      %54 = vector.broadcast %53 : vector<8x1xi1> to vector<8x256xi1>
      %55 = arith.select %54, %50, %arg11 : vector<8x256xi1>, vector<8x256xf32>
      %56 = arith.truncf %55 : vector<8x256xf32> to vector<8x256xbf16>
      scf.yield %55, %56 : vector<8x256xf32>, vector<8x256xbf16>
    }
    %c0_13 = arith.constant 0 : index
    %c0_14 = arith.constant 0 : index
    %17 = vector.load %arg8[%c0_13, %c0_14] : memref<8x256xf32, #tpu.memory_space<vmem>>, vector<8x256xf32>
    tpu.vector_store %arg8[%c0_13, %c0_14], %16#0 {strides = array<i32>} : memref<8x256xf32, #tpu.memory_space<vmem>>, vector<8x256xf32>,
    return
  }
  func.func @transform_0(%arg0: i32, %arg1: memref<1xi32, #tpu.memory_space<smem>>) -> (i32, i32) {
    %c0_i32 = arith.constant 0 : i32
    %c0_i32_0 = arith.constant 0 : i32
    %c0_i32_1 = arith.constant 0 : i32
    return %c0_i32, %c0_i32_0 : i32, i32
  }
  func.func @transform_1(%arg0: i32, %arg1: memref<1xi32, #tpu.memory_space<smem>>) -> (i32, i32) {
    %c0_i32 = arith.constant 0 : i32
    %c0_i32_0 = arith.constant 0 : i32
    %c0_i32_1 = arith.constant 0 : i32
    return %c0_i32, %c0_i32_0 : i32, i32
  }
  func.func @transform_2(%arg0: i32, %arg1: memref<1xi32, #tpu.memory_space<smem>>) -> (i32, i32) {
    %c0_i32 = arith.constant 0 : i32
    %c0_i32_0 = arith.constant 0 : i32
    %c0_i32_1 = arith.constant 0 : i32
    return %c0_i32, %c0_i32_0 : i32, i32
  }
  func.func @transform_3(%arg0: i32, %arg1: memref<1xi32, #tpu.memory_space<smem>>) -> (i32, i32) {
    %c0_i32 = arith.constant 0 : i32
    %c0_i32_0 = arith.constant 0 : i32
    %c0_i32_1 = arith.constant 0 : i32
    return %c0_i32, %c0_i32_0 : i32, i32
  }
  func.func @transform_4(%arg0: i32, %arg1: memref<1xi32, #tpu.memory_space<smem>>) -> (i32, i32) {
    %c0_i32 = arith.constant 0 : i32
    %c0_i32_0 = arith.constant 0 : i32
    %c0_i32_1 = arith.constant 0 : i32
    return %c0_i32, %c0_i32_0 : i32, i32
  }
  func.func @transform_5(%arg0: i32, %arg1: memref<1xi32, #tpu.memory_space<smem>>) -> (i32, i32) {
    %c0_i32 = arith.constant 0 : i32
    %c0_i32_0 = arith.constant 0 : i32
    %c0_i32_1 = arith.constant 0 : i32
    return %c0_i32, %c0_i32_0 : i32, i32
  }
  func.func @transform_6(%arg0: i32, %arg1: memref<1xi32, #tpu.memory_space<smem>>) -> (i32, i32) {
    %c0_i32 = arith.constant 0 : i32
    %c0_i32_0 = arith.constant 0 : i32
    %c0_i32_1 = arith.constant 0 : i32
    return %c0_i32, %c0_i32_0 : i32, i32
  }
}

module attributes {stable_mosaic.version = 11 : i64} {
  func.func @gru_seq_kernel(%arg0: i32, %arg1: memref<1xi32, #tpu.memory_space<smem>>, %arg2: memref<8x1xi32, #tpu.memory_space<vmem>>, %arg3: memref<64x128xbf16, #tpu.memory_space<vmem>>, %arg4: memref<128x768xbf16, #tpu.memory_space<vmem>>, %arg5: memref<256x768xbf16, #tpu.memory_space<vmem>>, %arg6: memref<1x768xf32, #tpu.memory_space<vmem>>, %arg7: memref<1x256xf32, #tpu.memory_space<vmem>>, %arg8: memref<8x256xf32, #tpu.memory_space<vmem>>, %arg9: memref<64x768xf32, #tpu.memory_space<vmem>>) attributes {dimension_semantics = [#tpu.dimension_semantics<arbitrary>], iteration_bounds = array<i64: 1>, scalar_prefetch = 1 : i64, scratch_operands = 1 : i64, tpu.core_type = #tpu.core_type<tc>, window_params = [{pipeline_mode = #tpu.pipeline_mode<synchronous>, transform_indices = @transform_0, window_bounds = array<i64: 8, 1>}, {pipeline_mode = #tpu.pipeline_mode<synchronous>, transform_indices = @transform_1, window_bounds = array<i64: 64, 128>}, {pipeline_mode = #tpu.pipeline_mode<synchronous>, transform_indices = @transform_2, window_bounds = array<i64: 128, 768>}, {pipeline_mode = #tpu.pipeline_mode<synchronous>, transform_indices = @transform_3, window_bounds = array<i64: 256, 768>}, {pipeline_mode = #tpu.pipeline_mode<synchronous>, transform_indices = @transform_4, window_bounds = array<i64: 1, 768>}, {pipeline_mode = #tpu.pipeline_mode<synchronous>, transform_indices = @transform_5, window_bounds = array<i64: 1, 256>}, {pipeline_mode = #tpu.pipeline_mode<synchronous>, transform_indices = @transform_6, window_bounds = array<i64: 8, 256>}]} {
    %c0 = arith.constant 0 : index
    %c0_0 = arith.constant 0 : index
    %0 = vector.load %arg3[%c0, %c0_0] : memref<64x128xbf16, #tpu.memory_space<vmem>>, vector<64x128xbf16>
    %c0_1 = arith.constant 0 : index
    %c0_2 = arith.constant 0 : index
    %1 = vector.load %arg4[%c0_1, %c0_2] : memref<128x768xbf16, #tpu.memory_space<vmem>>, vector<128x768xbf16>
    %cst = arith.constant dense<0.000000e+00> : vector<64x768xf32>
    %2 = tpu.matmul %0, %1, %cst {dimension_numbers = #tpu.dot_dimension_numbers<[1], [0], [0], [1], [0, 0, 1, 1], [], []>} : vector<64x128xbf16>, vector<128x768xbf16>, vector<64x768xf32> -> vector<64x768xf32>
    %c0_3 = arith.constant 0 : index
    %c0_4 = arith.constant 0 : index
    %3 = vector.load %arg6[%c0_3, %c0_4] : memref<1x768xf32, #tpu.memory_space<vmem>>, vector<1x768xf32>
    %4 = vector.broadcast %3 : vector<1x768xf32> to vector<64x768xf32>
    %5 = arith.addf %2, %4 : vector<64x768xf32>
    %c0_5 = arith.constant 0 : index
    %c0_6 = arith.constant 0 : index
    %6 = vector.load %arg9[%c0_5, %c0_6] : memref<64x768xf32, #tpu.memory_space<vmem>>, vector<64x768xf32>
    tpu.vector_store %arg9[%c0_5, %c0_6], %5 {strides = array<i32>} : memref<64x768xf32, #tpu.memory_space<vmem>>, vector<64x768xf32>,
    %c0_7 = arith.constant 0 : index
    %c0_8 = arith.constant 0 : index
    %7 = vector.load %arg2[%c0_7, %c0_8] : memref<8x1xi32, #tpu.memory_space<vmem>>, vector<8x1xi32>
    %c0_9 = arith.constant 0 : index
    %c0_10 = arith.constant 0 : index
    %8 = vector.load %arg7[%c0_9, %c0_10] : memref<1x256xf32, #tpu.memory_space<vmem>>, vector<1x256xf32>
    %9 = vector.shape_cast %8 : vector<1x256xf32> to vector<1x256xf32>
    %10 = vector.broadcast %9 : vector<1x256xf32> to vector<8x256xf32>
    %cst_11 = arith.constant 0.000000e+00 : f32
    %11 = vector.broadcast %cst_11 : f32 to vector<8x256xf32>
    %12 = arith.truncf %11 : vector<8x256xf32> to vector<8x256xbf16>
    %c0_12 = arith.constant 0 : index
    %13 = memref.load %arg1[%c0_12] : memref<1xi32, #tpu.memory_space<smem>>
    %c0_i32 = arith.constant 0 : i32
    %14 = arith.subi %13, %c0_i32 : i32
    %15 = arith.addi %c0_i32, %14 : i32
    %c1_i32 = arith.constant 1 : i32
    %16:2 = scf.for %arg10 = %c0_i32 to %15 step %c1_i32 iter_args(%arg11 = %11, %arg12 = %12) -> (vector<8x256xf32>, vector<8x256xbf16>)  : i32 {
      %c0_15 = arith.constant 0 : index
      %c0_16 = arith.constant 0 : index
      %18 = vector.load %arg5[%c0_15, %c0_16] : memref<256x768xbf16, #tpu.memory_space<vmem>>, vector<256x768xbf16>
      %cst_17 = arith.constant dense<0.000000e+00> : vector<8x768xf32>
      %19 = tpu.matmul %arg12, %18, %cst_17 {dimension_numbers = #tpu.dot_dimension_numbers<[1], [0], [0], [1], [0, 0, 1, 1], [], []>} : vector<8x256xbf16>, vector<256x768xbf16>, vector<8x768xf32> -> vector<8x768xf32>
      %c8_i32 = arith.constant 8 : i32
      %20 = arith.muli %arg10, %c8_i32 : i32
      %21 = tpu.assume_multiple %20, 8 : i32
      %22 = arith.index_cast %21 : i32 to index
      %c0_18 = arith.constant 0 : index
      %23 = vector.load %arg9[%22, %c0_18] : memref<64x768xf32, #tpu.memory_space<vmem>>, vector<8x768xf32>
      %24 = vector.extract_strided_slice %23 {offsets = [0, 0], sizes = [8, 256], strides = [1, 1]} : vector<8x768xf32> to vector<8x256xf32>
      %25 = vector.extract_strided_slice %19 {offsets = [0, 0], sizes = [8, 256], strides = [1, 1]} : vector<8x768xf32> to vector<8x256xf32>
      %26 = arith.addf %24, %25 : vector<8x256xf32>
      %27 = arith.negf %26 : vector<8x256xf32>
      %28 = math.exp %27 : vector<8x256xf32>
      %cst_19 = arith.constant 1.000000e+00 : f32
      %29 = vector.broadcast %cst_19 : f32 to vector<8x256xf32>
      %30 = arith.addf %29, %28 : vector<8x256xf32>
      %31 = arith.divf %29, %30 : vector<8x256xf32>
      %32 = vector.extract_strided_slice %23 {offsets = [0, 256], sizes = [8, 256], strides = [1, 1]} : vector<8x768xf32> to vector<8x256xf32>
      %33 = vector.extract_strided_slice %19 {offsets = [0, 256], sizes = [8, 256], strides = [1, 1]} : vector<8x768xf32> to vector<8x256xf32>
      %34 = arith.addf %32, %33 : vector<8x256xf32>
      %35 = arith.negf %34 : vector<8x256xf32>
      %36 = math.exp %35 : vector<8x256xf32>
      %cst_20 = arith.constant 1.000000e+00 : f32
      %37 = vector.broadcast %cst_20 : f32 to vector<8x256xf32>
      %38 = arith.addf %37, %36 : vector<8x256xf32>
      %39 = arith.divf %37, %38 : vector<8x256xf32>
      %40 = vector.extract_strided_slice %23 {offsets = [0, 512], sizes = [8, 256], strides = [1, 1]} : vector<8x768xf32> to vector<8x256xf32>
      %41 = vector.extract_strided_slice %19 {offsets = [0, 512], sizes = [8, 256], strides = [1, 1]} : vector<8x768xf32> to vector<8x256xf32>
      %42 = arith.addf %41, %10 : vector<8x256xf32>
      %43 = arith.mulf %31, %42 : vector<8x256xf32>
      %44 = arith.addf %40, %43 : vector<8x256xf32>
      %45 = math.tanh %44 : vector<8x256xf32>
      %cst_21 = arith.constant 1.000000e+00 : f32
      %46 = vector.broadcast %cst_21 : f32 to vector<8x256xf32>
      %47 = arith.subf %46, %39 : vector<8x256xf32>
      %48 = arith.mulf %47, %45 : vector<8x256xf32>
      %49 = arith.mulf %39, %arg11 : vector<8x256xf32>
      %50 = arith.addf %48, %49 : vector<8x256xf32>
      %51 = vector.broadcast %arg10 : i32 to vector<8x1xi32>
      %52 = arith.cmpi slt, %51, %7 : vector<8x1xi32>
      %53 = vector.shape_cast %52 : vector<8x1xi1> to vector<8x1xi1>
      %54 = vector.broadcast %53 : vector<8x1xi1> to vector<8x256xi1>
      %55 = arith.select %54, %50, %arg11 : vector<8x256xi1>, vector<8x256xf32>
      %56 = arith.truncf %55 : vector<8x256xf32> to vector<8x256xbf16>
      scf.yield %55, %56 : vector<8x256xf32>, vector<8x256xbf16>
    }
    %c0_13 = arith.constant 0 : index
    %c0_14 = arith.constant 0 : index
    %17 = vector.load %arg8[%c0_13, %c0_14] : memref<8x256xf32, #tpu.memory_space<vmem>>, vector<8x256xf32>
    tpu.vector_store %arg8[%c0_13, %c0_14], %16#0 {strides = array<i32>} : memref<8x256xf32, #tpu.memory_space<vmem>>, vector<8x256xf32>,
    return
  }
  func.func @transform_0(%arg0: i32, %arg1: memref<1xi32, #tpu.memory_space<smem>>) -> (i32, i32) {
    %c0_i32 = arith.constant 0 : i32
    %c0_i32_0 = arith.constant 0 : i32
    %c0_i32_1 = arith.constant 0 : i32
    return %c0_i32, %c0_i32_0 : i32, i32
  }
  func.func @transform_1(%arg0: i32, %arg1: memref<1xi32, #tpu.memory_space<smem>>) -> (i32, i32) {
    %c0_i32 = arith.constant 0 : i32
    %c0_i32_0 = arith.constant 0 : i32
    %c0_i32_1 = arith.constant 0 : i32
    return %c0_i32, %c0_i32_0 : i32, i32
  }
  func.func @transform_2(%arg0: i32, %arg1: memref<1xi32, #tpu.memory_space<smem>>) -> (i32, i32) {
    %c0_i32 = arith.constant 0 : i32
    %c0_i32_0 = arith.constant 0 : i32
    %c0_i32_1 = arith.constant 0 : i32
    return %c0_i32, %c0_i32_0 : i32, i32
  }
  func.func @transform_3(%arg0: i32, %arg1: memref<1xi32, #tpu.memory_space<smem>>) -> (i32, i32) {
    %c0_i32 = arith.constant 0 : i32
    %c0_i32_0 = arith.constant 0 : i32
    %c0_i32_1 = arith.constant 0 : i32
    return %c0_i32, %c0_i32_0 : i32, i32
  }
  func.func @transform_4(%arg0: i32, %arg1: memref<1xi32, #tpu.memory_space<smem>>) -> (i32, i32) {
    %c0_i32 = arith.constant 0 : i32
    %c0_i32_0 = arith.constant 0 : i32
    %c0_i32_1 = arith.constant 0 : i32
    return %c0_i32, %c0_i32_0 : i32, i32
  }
  func.func @transform_5(%arg0: i32, %arg1: memref<1xi32, #tpu.memory_space<smem>>) -> (i32, i32) {
    %c0_i32 = arith.constant 0 : i32
    %c0_i32_0 = arith.constant 0 : i32
    %c0_i32_1 = arith.constant 0 : i32
    return %c0_i32, %c0_i32_0 : i32, i32
  }
  func.func @transform_6(%arg0: i32, %arg1: memref<1xi32, #tpu.memory_space<smem>>) -> (i32, i32) {
    %c0_i32 = arith.constant 0 : i32
    %c0_i32_0 = arith.constant 0 : i32
    %c0_i32_1 = arith.constant 0 : i32
    return %c0_i32, %c0_i32_0 : i32, i32
  }
}

</mosaic_0001>

<llo_original>
// kernel: tpu_custom_call.1
$region0: #{tpu_custom_call.1}
  #allocation0 [shape = 'u32[]', space=smem, size = 0x4, offset = 0x4, fixed_abs, tag = 'smem constant byte address 0x4 - core index']
  #allocation1 [shape = 'u32[72,128]{1,0:T(1,128)}', space=vmem, size = 0x9000, scoped, tag = 'internal scratch']
  #allocation2 [shape = 'f32[64,768]{1,0:T(8,128)}', space=vmem, size = 0x30000, scoped, tag = 'scratch operand']
  #allocation3 [shape = 's32[1]{0}', space=sflag, size = 0x4, scoped, tag = 'scoped memory for tpu_custom_call.1']
  #allocation4 [shape = 's32[1]{0:T(128)S(6)}', space=smem, size = 0x200, scoped, tag = 'prefetched SMEM operand 0']
  %s0 = inlined_call_operand.<no memory space> [shape: s32[1], index: 0, kind: input, shape index: {}]
  %s1 = inlined_call_operand.vmem [shape: s32[8,1], index: 1, kind: input, shape index: {}]
  %s2 = inlined_call_operand.hbm [shape: bf16[64,128], index: 2, kind: input, shape index: {}]
  %s3 = inlined_call_operand.hbm [shape: bf16[128,768], index: 3, kind: input, shape index: {}]
  %s4 = inlined_call_operand.hbm [shape: bf16[256,768], index: 4, kind: input, shape index: {}]
  %s5 = inlined_call_operand.vmem [shape: f32[1,768], index: 5, kind: input, shape index: {}]
  %s6 = inlined_call_operand.vmem [shape: f32[1,256], index: 6, kind: input, shape index: {}]
  %s7 = inlined_call_operand.hbm [shape: f32[8,256], index: 7, kind: output, shape index: {}]
  %s8 = sld [smem:[#allocation0]]
  $region53: #{tpu_custom_call.1} parent=0
    _
  %s10 = ssub.s32 1, %s8
  %s11 = scalar_select 0, %s10, %s8
  %12 = sst [smem:[#allocation4]] %s0
  $region1: #{tpu_custom_call.1} parent=0
    #allocation5 [shape = 'u8[16384]{0}', space=vmem, size = 0x4000, scoped, tag = 'input window, operand 2, single buffered']
    #allocation6 [shape = 's32[1]{0}', space=sflag, size = 0x4, scoped, tag = 'scoped memory for tpu_custom_call.1']
    #allocation7 [shape = 's32[1]{0}', space=sflag, size = 0x4, scoped, tag = 'scoped memory for tpu_custom_call.1']
    #allocation8 [shape = 'u8[196608]{0}', space=vmem, size = 0x30000, scoped, tag = 'input window, operand 3, single buffered']
    #allocation9 [shape = 's32[1]{0}', space=sflag, size = 0x4, scoped, tag = 'scoped memory for tpu_custom_call.1']
    #allocation10 [shape = 'u8[393216]{0}', space=vmem, size = 0x60000, scoped, tag = 'input window, operand 4, single buffered']
    #allocation11 [shape = 'u8[8192]{0}', space=vmem, size = 0x2000, scoped, tag = 'output window, operand 0, single buffered']
    %13 = vsyncpa [#allocation6], 0
    %14 = vsyncpa [#allocation9], 0
    %15 = vsyncpa [#allocation7], 0
    // Predicated region
    $region2: #{tpu_custom_call.1} parent=1 // pred_check
      _
    $region3: #{tpu_custom_call.1} parent=1 // pred_check_branch
      %17 = sbr.rel (0) target = $region5
    $region4: #{tpu_custom_call.1} parent=1 // pred_region
      _
    $region5: #{tpu_custom_call.1} parent=1 // pred_fallthru
      _
    // Predicated region
    $region6: #{tpu_custom_call.1} parent=1 // pred_check
      _
    $region7: #{tpu_custom_call.1} parent=1 // pred_check_branch
      %19 = sbr.rel (0) target = $region9
    $region8: #{tpu_custom_call.1} parent=1 // pred_region
      %21 = vsyncadd [#allocation6], 0
      %s22 = sshll.u32 %s2, 4
      %s23 = int_to_ptr.hbm [resolvable:$true] %s22
      %s24 = sshll.u32 [#allocation5], 4
      %s25 = int_to_ptr.vmem [resolvable:$true] %s24
      %30 = dma.hbm_to_vmem [thread:$0]  %s23, 512, %s25, [#allocation6], 64, 64, 4
    $region9: #{tpu_custom_call.1} parent=1 // pred_fallthru
      _
    // Predicated region
    $region10: #{tpu_custom_call.1} parent=1 // pred_check
      _
    $region11: #{tpu_custom_call.1} parent=1 // pred_check_branch
      %32 = sbr.rel (0) target = $region13
    $region12: #{tpu_custom_call.1} parent=1 // pred_region
      %34 = vsyncadd [#allocation9], 0
      %s35 = sshll.u32 %s3, 4
      %s36 = int_to_ptr.hbm [resolvable:$true] %s35
      %s37 = sshll.u32 [#allocation8], 4
      %s38 = int_to_ptr.vmem [resolvable:$true] %s37
      %43 = dma.hbm_to_vmem [thread:$0]  %s36, 6144, %s38, [#allocation9], 384, 384, 24
    $region13: #{tpu_custom_call.1} parent=1 // pred_fallthru
      _
    // Predicated region
    $region14: #{tpu_custom_call.1} parent=1 // pred_check
      _
    $region15: #{tpu_custom_call.1} parent=1 // pred_check_branch
      %45 = sbr.rel (0) target = $region17
    $region16: #{tpu_custom_call.1} parent=1 // pred_region
      %47 = vsyncadd [#allocation9], 0
      %s48 = sshll.u32 %s4, 4
      %s49 = int_to_ptr.hbm [resolvable:$true] %s48
      %s50 = sshll.u32 [#allocation10], 4
      %s51 = int_to_ptr.vmem [resolvable:$true] %s50
      %56 = dma.hbm_to_vmem [thread:$0]  %s49, 12288, %s51, [#allocation9], 384, 384, 24
    $region17: #{tpu_custom_call.1} parent=1 // pred_fallthru
      _
    // Predicated region
    $region18: #{tpu_custom_call.1} parent=1 // pred_check
      _
    $region19: #{tpu_custom_call.1} parent=1 // pred_check_branch
      %58 = sbr.rel (0) target = $region21
    $region20: #{tpu_custom_call.1} parent=1 // pred_region
      _
    $region21: #{tpu_custom_call.1} parent=1 // pred_fallthru
      _
    // Predicated region
    $region22: #{tpu_custom_call.1} parent=1 // pred_check
      _
    $region23: #{tpu_custom_call.1} parent=1 // pred_check_branch
      %60 = sbr.rel (0) target = $region25
    $region24: #{tpu_custom_call.1} parent=1 // pred_region
      _
    $region25: #{tpu_custom_call.1} parent=1 // pred_fallthru
      _
    // Predicated region
    $region26: #{tpu_custom_call.1} parent=1 // pred_check
      _
    $region27: #{tpu_custom_call.1} parent=1 // pred_check_branch
      %62 = sbr.rel (0) target = $region29
    $region28: #{tpu_custom_call.1} parent=1 // pred_region
      %64 = dma.done [#allocation6], 512
    $region29: #{tpu_custom_call.1} parent=1 // pred_fallthru
      _
    // Predicated region
    $region30: #{tpu_custom_call.1} parent=1 // pred_check
      _
    $region31: #{tpu_custom_call.1} parent=1 // pred_check_branch
      %66 = sbr.rel (0) target = $region33
    $region32: #{tpu_custom_call.1} parent=1 // pred_region
      %68 = dma.done [#allocation9], 6144
    $region33: #{tpu_custom_call.1} parent=1 // pred_fallthru
      _
    // Predicated region
    $region34: #{tpu_custom_call.1} parent=1 // pred_check
      _
    $region35: #{tpu_custom_call.1} parent=1 // pred_check_branch
      %70 = sbr.rel (0) target = $region37
    $region36: #{tpu_custom_call.1} parent=1 // pred_region
      %72 = dma.done [#allocation9], 12288
    $region37: #{tpu_custom_call.1} parent=1 // pred_fallthru
      _
    %v74 = vld [vmem:[#allocation5] sm:$0xf]
    %v75 = vld [vmem:[#allocation5 + $0x4] sm:$0xf]
    %v76 = vld [vmem:[#allocation5 + $0x8] sm:$0xf]
    %v77 = vld [vmem:[#allocation5 + $0xc] sm:$0xf]
    %v78 = vld [vmem:[#allocation5 + $0x10] sm:$0xf]
    %v79 = vld [vmem:[#allocation5 + $0x14] sm:$0xf]
    %v80 = vld [vmem:[#allocation5 + $0x18] sm:$0xf]
    %v81 = vld [vmem:[#allocation5 + $0x1c] sm:$0xf]
    %v82 = vld [vmem:[#allocation8] sm:$0xff]
    %v83 = vld [vmem:[#allocation8 + $0x8] sm:$0xff]
    %v84 = vld [vmem:[#allocation8 + $0x10] sm:$0xff]
    %v85 = vld [vmem:[#allocation8 + $0x18] sm:$0xff]
    %v86 = vld [vmem:[#allocation8 + $0x20] sm:$0xff]
    %v87 = vld [vmem:[#allocation8 + $0x28] sm:$0xff]
    %v88 = vld [vmem:[#allocation8 + $0x30] sm:$0xff]
    %v89 = vld [vmem:[#allocation8 + $0x38] sm:$0xff]
    %v90 = vld [vmem:[#allocation8 + $0x40] sm:$0xff]
    %v91 = vld [vmem:[#allocation8 + $0x48] sm:$0xff]
    %v92 = vld [vmem:[#allocation8 + $0x50] sm:$0xff]
    %v93 = vld [vmem:[#allocation8 + $0x58] sm:$0xff]
    %v94 = vld [vmem:[#allocation8 + $0x60] sm:$0xff]
    %v95 = vld [vmem:[#allocation8 + $0x68] sm:$0xff]
    %v96 = vld [vmem:[#allocation8 + $0x70] sm:$0xff]
    %v97 = vld [vmem:[#allocation8 + $0x78] sm:$0xff]
    %v98 = vld [vmem:[#allocation8 + $0x80] sm:$0xff]
    %v99 = vld [vmem:[#allocation8 + $0x88] sm:$0xff]
    %v100 = vld [vmem:[#allocation8 + $0x90] sm:$0xff]
    %v101 = vld [vmem:[#allocation8 + $0x98] sm:$0xff]
    %v102 = vld [vmem:[#allocation8 + $0xa0] sm:$0xff]
    %v103 = vld [vmem:[#allocation8 + $0xa8] sm:$0xff]
    %v104 = vld [vmem:[#allocation8 + $0xb0] sm:$0xff]
    %v105 = vld [vmem:[#allocation8 + $0xb8] sm:$0xff]
    %v106 = vld [vmem:[#allocation8 + $0xc0] sm:$0xff]
    %v107 = vld [vmem:[#allocation8 + $0xc8] sm:$0xff]
    %v108 = vld [vmem:[#allocation8 + $0xd0] sm:$0xff]
    %v109 = vld [vmem:[#allocation8 + $0xd8] sm:$0xff]
    %v110 = vld [vmem:[#allocation8 + $0xe0] sm:$0xff]
    %v111 = vld [vmem:[#allocation8 + $0xe8] sm:$0xff]
    %v112 = vld [vmem:[#allocation8 + $0xf0] sm:$0xff]
    %v113 = vld [vmem:[#allocation8 + $0xf8] sm:$0xff]
    %v114 = vld [vmem:[#allocation8 + $0x100] sm:$0xff]
    %v115 = vld [vmem:[#allocation8 + $0x108] sm:$0xff]
    %v116 = vld [vmem:[#allocation8 + $0x110] sm:$0xff]
    %v117 = vld [vmem:[#allocation8 + $0x118] sm:$0xff]
    %v118 = vld [vmem:[#allocation8 + $0x120] sm:$0xff]
    %v119 = vld [vmem:[#allocation8 + $0x128] sm:$0xff]
    %v120 = vld [vmem:[#allocation8 + $0x130] sm:$0xff]
    %v121 = vld [vmem:[#allocation8 + $0x138] sm:$0xff]
    %v122 = vld [vmem:[#allocation8 + $0x140] sm:$0xff]
    %v123 = vld [vmem:[#allocation8 + $0x148] sm:$0xff]
    %v124 = vld [vmem:[#allocation8 + $0x150] sm:$0xff]
    %v125 = vld [vmem:[#allocation8 + $0x158] sm:$0xff]
    %v126 = vld [vmem:[#allocation8 + $0x160] sm:$0xff]
    %v127 = vld [vmem:[#allocation8 + $0x168] sm:$0xff]
    %v128 = vld [vmem:[#allocation8 + $0x170] sm:$0xff]
    %v129 = vld [vmem:[#allocation8 + $0x178] sm:$0xff]
    %v130 = vld [vmem:[%s5] sm:$0x3f]
    %v132 = vperm.slane %v130, 0
    %v133 = vperm.slane %v130, 1
    %v134 = vperm.slane %v130, 2
    %v135 = vperm.slane %v130, 3
    %v136 = vperm.slane %v130, 4
    %v137 = vperm.slane %v130, 5
    %v152 = vunpack.c.l.b16 %v74
    %v153 = vunpack.c.l.b16 %v75
    %v154 = vunpack.c.l.b16 %v76
    %v155 = vunpack.c.l.b16 %v77
    %v156 = vunpack.c.l.b16 %v78
    %v157 = vunpack.c.l.b16 %v79
    %v158 = vunpack.c.l.b16 %v80
    %v159 = vunpack.c.l.b16 %v81
    %v160 = vpack.c.b16 %v153, %v152
    %v161 = vpack.c.b16 %v155, %v154
    %v162 = vpack.c.b16 %v157, %v156
    %v163 = vpack.c.b16 %v159, %v158
    %v216 = vunpack.c.l.b16 %v82
    %v217 = vunpack.c.h.b16 %v82
    %v218 = vunpack.c.l.b16 %v83
    %v219 = vunpack.c.h.b16 %v83
    %v220 = vunpack.c.l.b16 %v84
    %v221 = vunpack.c.h.b16 %v84
    %v222 = vunpack.c.l.b16 %v85
    %v223 = vunpack.c.h.b16 %v85
    %v224 = vunpack.c.l.b16 %v86
    %v225 = vunpack.c.h.b16 %v86
    %v226 = vunpack.c.l.b16 %v87
    %v227 = vunpack.c.h.b16 %v87
    %v228 = vunpack.c.l.b16 %v88
    %v229 = vunpack.c.h.b16 %v88
    %v230 = vunpack.c.l.b16 %v89
    %v231 = vunpack.c.h.b16 %v89
    %v232 = vunpack.c.l.b16 %v90
    %v233 = vunpack.c.h.b16 %v90
    %v234 = vunpack.c.l.b16 %v91
    %v235 = vunpack.c.h.b16 %v91
    %v236 = vunpack.c.l.b16 %v92
    %v237 = vunpack.c.h.b16 %v92
    %v238 = vunpack.c.l.b16 %v93
    %v239 = vunpack.c.h.b16 %v93
    %v240 = vunpack.c.l.b16 %v94
    %v241 = vunpack.c.h.b16 %v94
    %v242 = vunpack.c.l.b16 %v95
    %v243 = vunpack.c.h.b16 %v95
    %v244 = vunpack.c.l.b16 %v96
    %v245 = vunpack.c.h.b16 %v96
    %v246 = vunpack.c.l.b16 %v97
    %v247 = vunpack.c.h.b16 %v97
    %v248 = vunpack.c.l.b16 %v98
    %v249 = vunpack.c.h.b16 %v98
    %v250 = vunpack.c.l.b16 %v99
    %v251 = vunpack.c.h.b16 %v99
    %v252 = vunpack.c.l.b16 %v100
    %v253 = vunpack.c.h.b16 %v100
    %v254 = vunpack.c.l.b16 %v101
    %v255 = vunpack.c.h.b16 %v101
    %v256 = vunpack.c.l.b16 %v102
    %v257 = vunpack.c.h.b16 %v102
    %v258 = vunpack.c.l.b16 %v103
    %v259 = vunpack.c.h.b16 %v103
    %v260 = vunpack.c.l.b16 %v104
    %v261 = vunpack.c.h.b16 %v104
    %v262 = vunpack.c.l.b16 %v105
    %v263 = vunpack.c.h.b16 %v105
    %v264 = vunpack.c.l.b16 %v106
    %v265 = vunpack.c.h.b16 %v106
    %v266 = vunpack.c.l.b16 %v107
    %v267 = vunpack.c.h.b16 %v107
    %v268 = vunpack.c.l.b16 %v108
    %v269 = vunpack.c.h.b16 %v108
    %v270 = vunpack.c.l.b16 %v109
    %v271 = vunpack.c.h.b16 %v109
    %v272 = vunpack.c.l.b16 %v110
    %v273 = vunpack.c.h.b16 %v110
    %v274 = vunpack.c.l.b16 %v111
    %v275 = vunpack.c.h.b16 %v111
    %v276 = vunpack.c.l.b16 %v112
    %v277 = vunpack.c.h.b16 %v112
    %v278 = vunpack.c.l.b16 %v113
    %v279 = vunpack.c.h.b16 %v113
    %v280 = vunpack.c.l.b16 %v114
    %v281 = vunpack.c.h.b16 %v114
    %v282 = vunpack.c.l.b16 %v115
    %v283 = vunpack.c.h.b16 %v115
    %v284 = vunpack.c.l.b16 %v116
    %v285 = vunpack.c.h.b16 %v116
    %v286 = vunpack.c.l.b16 %v117
    %v287 = vunpack.c.h.b16 %v117
    %v288 = vunpack.c.l.b16 %v118
    %v289 = vunpack.c.h.b16 %v118
    %v290 = vunpack.c.l.b16 %v119
    %v291 = vunpack.c.h.b16 %v119
    %v292 = vunpack.c.l.b16 %v120
    %v293 = vunpack.c.h.b16 %v120
    %v294 = vunpack.c.l.b16 %v121
    %v295 = vunpack.c.h.b16 %v121
    %v296 = vunpack.c.l.b16 %v122
    %v297 = vunpack.c.h.b16 %v122
    %v298 = vunpack.c.l.b16 %v123
    %v299 = vunpack.c.h.b16 %v123
    %v300 = vunpack.c.l.b16 %v124
    %v301 = vunpack.c.h.b16 %v124
    %v302 = vunpack.c.l.b16 %v125
    %v303 = vunpack.c.h.b16 %v125
    %v304 = vunpack.c.l.b16 %v126
    %v305 = vunpack.c.h.b16 %v126
    %v306 = vunpack.c.l.b16 %v127
    %v307 = vunpack.c.h.b16 %v127
    %v308 = vunpack.c.l.b16 %v128
    %v309 = vunpack.c.h.b16 %v128
    %v310 = vunpack.c.l.b16 %v129
    %v311 = vunpack.c.h.b16 %v129
    %v312 = vpack.c.b16 %v222, %v216
    %v313 = vpack.c.b16 %v223, %v217
    %v314 = vpack.c.b16 %v224, %v218
    %v315 = vpack.c.b16 %v225, %v219
    %v316 = vpack.c.b16 %v226, %v220
    %v317 = vpack.c.b16 %v227, %v221
    %v318 = vpack.c.b16 %v234, %v228
    %v319 = vpack.c.b16 %v235, %v229
    %v320 = vpack.c.b16 %v236, %v230
    %v321 = vpack.c.b16 %v237, %v231
    %v322 = vpack.c.b16 %v238, %v232
    %v323 = vpack.c.b16 %v239, %v233
    %v324 = vpack.c.b16 %v246, %v240
    %v325 = vpack.c.b16 %v247, %v241
    %v326 = vpack.c.b16 %v248, %v242
    %v327 = vpack.c.b16 %v249, %v243
    %v328 = vpack.c.b16 %v250, %v244
    %v329 = vpack.c.b16 %v251, %v245
    %v330 = vpack.c.b16 %v258, %v252
    %v331 = vpack.c.b16 %v259, %v253
    %v332 = vpack.c.b16 %v260, %v254
    %v333 = vpack.c.b16 %v261, %v255
    %v334 = vpack.c.b16 %v262, %v256
    %v335 = vpack.c.b16 %v263, %v257
    %v336 = vpack.c.b16 %v270, %v264
    %v337 = vpack.c.b16 %v271, %v265
    %v338 = vpack.c.b16 %v272, %v266
    %v339 = vpack.c.b16 %v273, %v267
    %v340 = vpack.c.b16 %v274, %v268
    %v341 = vpack.c.b16 %v275, %v269
    %v342 = vpack.c.b16 %v282, %v276
    %v343 = vpack.c.b16 %v283, %v277
    %v344 = vpack.c.b16 %v284, %v278
    %v345 = vpack.c.b16 %v285, %v279
    %v346 = vpack.c.b16 %v286, %v280
    %v347 = vpack.c.b16 %v287, %v281
    %v348 = vpack.c.b16 %v294, %v288
    %v349 = vpack.c.b16 %v295, %v289
    %v350 = vpack.c.b16 %v296, %v290
    %v351 = vpack.c.b16 %v297, %v291
    %v352 = vpack.c.b16 %v298, %v292
    %v353 = vpack.c.b16 %v299, %v293
    %v354 = vpack.c.b16 %v306, %v300
    %v355 = vpack.c.b16 %v307, %v301
    %v356 = vpack.c.b16 %v308, %v302
    %v357 = vpack.c.b16 %v309, %v303
    %v358 = vpack.c.b16 %v310, %v304
    %v359 = vpack.c.b16 %v311, %v305
    %408 = vmatpush.bf16.msra.mxu0 %v354
    %409 = vmatpush.bf16.msra.mxu0 %v348
    %410 = vmatpush.bf16.msra.mxu0 %v342
    %411 = vmatpush.bf16.msra.mxu0 %v336
    %412 = vmatpush.bf16.msra.mxu0 %v330
    %413 = vmatpush.bf16.msra.mxu0 %v324
    %414 = vmatpush.bf16.msra.mxu0 %v318
    %415 = vmatpush.bf16.msra.mxu0 %v312
    %416 = vmatmul.bf16.gmra.mxu0 %v160
    %v417 = vpop.f32.mrf.mxu0
    %v418 = vadd.f32 %v132, %v417
    %v419 = vpop.f32.mrf.mxu0
    %v420 = vadd.f32 %v132, %v419
    %421 = vmatmul.bf16.gmra.mxu0 %v161
    %v422 = vpop.f32.mrf.mxu0
    %v423 = vadd.f32 %v132, %v422
    %v424 = vpop.f32.mrf.mxu0
    %v425 = vadd.f32 %v132, %v424
    %426 = vmatmul.bf16.gmra.mxu0 %v162
    %v427 = vpop.f32.mrf.mxu0
    %v428 = vadd.f32 %v132, %v427
    %v429 = vpop.f32.mrf.mxu0
    %v430 = vadd.f32 %v132, %v429
    %431 = vmatmul.bf16.gmra.mxu0 %v163
    %v432 = vpop.f32.mrf.mxu0
    %v433 = vadd.f32 %v132, %v432
    %v434 = vpop.f32.mrf.mxu0
    %v435 = vadd.f32 %v132, %v434
    %436 = vdwg.mxu0
    %437 = vmatpush.bf16.msra.mxu0 %v355
    %438 = vmatpush.bf16.msra.mxu0 %v349
    %439 = vmatpush.bf16.msra.mxu0 %v343
    %440 = vmatpush.bf16.msra.mxu0 %v337
    %441 = vmatpush.bf16.msra.mxu0 %v331
    %442 = vmatpush.bf16.msra.mxu0 %v325
    %443 = vmatpush.bf16.msra.mxu0 %v319
    %444 = vmatpush.bf16.msra.mxu0 %v313
    %445 = vmatmul.bf16.gmra.mxu0 %v160
    %v446 = vpop.f32.mrf.mxu0
    %v447 = vadd.f32 %v133, %v446
    %v448 = vpop.f32.mrf.mxu0
    %v449 = vadd.f32 %v133, %v448
    %450 = vmatmul.bf16.gmra.mxu0 %v161
    %v451 = vpop.f32.mrf.mxu0
    %v452 = vadd.f32 %v133, %v451
    %v453 = vpop.f32.mrf.mxu0
    %v454 = vadd.f32 %v133, %v453
    %455 = vmatmul.bf16.gmra.mxu0 %v162
    %v456 = vpop.f32.mrf.mxu0
    %v457 = vadd.f32 %v133, %v456
    %v458 = vpop.f32.mrf.mxu0
    %v459 = vadd.f32 %v133, %v458
    %460 = vmatmul.bf16.gmra.mxu0 %v163
    %v461 = vpop.f32.mrf.mxu0
    %v462 = vadd.f32 %v133, %v461
    %v463 = vpop.f32.mrf.mxu0
    %v464 = vadd.f32 %v133, %v463
    %465 = vdwg.mxu0
    %466 = vmatpush.bf16.msra.mxu0 %v356
    %467 = vmatpush.bf16.msra.mxu0 %v350
    %468 = vmatpush.bf16.msra.mxu0 %v344
    %469 = vmatpush.bf16.msra.mxu0 %v338
    %470 = vmatpush.bf16.msra.mxu0 %v332
    %471 = vmatpush.bf16.msra.mxu0 %v326
    %472 = vmatpush.bf16.msra.mxu0 %v320
    %473 = vmatpush.bf16.msra.mxu0 %v314
    %474 = vmatmul.bf16.gmra.mxu0 %v160
    %v475 = vpop.f32.mrf.mxu0
    %v476 = vadd.f32 %v134, %v475
    %v477 = vpop.f32.mrf.mxu0
    %v478 = vadd.f32 %v134, %v477
    %479 = vmatmul.bf16.gmra.mxu0 %v161
    %v480 = vpop.f32.mrf.mxu0
    %v481 = vadd.f32 %v134, %v480
    %v482 = vpop.f32.mrf.mxu0
    %v483 = vadd.f32 %v134, %v482
    %484 = vmatmul.bf16.gmra.mxu0 %v162
    %v485 = vpop.f32.mrf.mxu0
    %v486 = vadd.f32 %v134, %v485
    %v487 = vpop.f32.mrf.mxu0
    %v488 = vadd.f32 %v134, %v487
    %489 = vmatmul.bf16.gmra.mxu0 %v163
    %v490 = vpop.f32.mrf.mxu0
    %v491 = vadd.f32 %v134, %v490
    %v492 = vpop.f32.mrf.mxu0
    %v493 = vadd.f32 %v134, %v492
    %494 = vdwg.mxu0
    %495 = vmatpush.bf16.msra.mxu0 %v357
    %496 = vmatpush.bf16.msra.mxu0 %v351
    %497 = vmatpush.bf16.msra.mxu0 %v345
    %498 = vmatpush.bf16.msra.mxu0 %v339
    %499 = vmatpush.bf16.msra.mxu0 %v333
    %500 = vmatpush.bf16.msra.mxu0 %v327
    %501 = vmatpush.bf16.msra.mxu0 %v321
    %502 = vmatpush.bf16.msra.mxu0 %v315
    %503 = vmatmul.bf16.gmra.mxu0 %v160
    %v504 = vpop.f32.mrf.mxu0
    %v505 = vadd.f32 %v135, %v504
    %v506 = vpop.f32.mrf.mxu0
    %v507 = vadd.f32 %v135, %v506
    %508 = vmatmul.bf16.gmra.mxu0 %v161
    %v509 = vpop.f32.mrf.mxu0
    %v510 = vadd.f32 %v135, %v509
    %v511 = vpop.f32.mrf.mxu0
    %v512 = vadd.f32 %v135, %v511
    %513 = vmatmul.bf16.gmra.mxu0 %v162
    %v514 = vpop.f32.mrf.mxu0
    %v515 = vadd.f32 %v135, %v514
    %v516 = vpop.f32.mrf.mxu0
    %v517 = vadd.f32 %v135, %v516
    %518 = vmatmul.bf16.gmra.mxu0 %v163
    %v519 = vpop.f32.mrf.mxu0
    %v520 = vadd.f32 %v135, %v519
    %v521 = vpop.f32.mrf.mxu0
    %v522 = vadd.f32 %v135, %v521
    %523 = vdwg.mxu0
    %524 = vmatpush.bf16.msra.mxu0 %v358
    %525 = vmatpush.bf16.msra.mxu0 %v352
    %526 = vmatpush.bf16.msra.mxu0 %v346
    %527 = vmatpush.bf16.msra.mxu0 %v340
    %528 = vmatpush.bf16.msra.mxu0 %v334
    %529 = vmatpush.bf16.msra.mxu0 %v328
    %530 = vmatpush.bf16.msra.mxu0 %v322
    %531 = vmatpush.bf16.msra.mxu0 %v316
    %532 = vmatmul.bf16.gmra.mxu0 %v160
    %v533 = vpop.f32.mrf.mxu0
    %v534 = vadd.f32 %v136, %v533
    %v535 = vpop.f32.mrf.mxu0
    %v536 = vadd.f32 %v136, %v535
    %537 = vmatmul.bf16.gmra.mxu0 %v161
    %v538 = vpop.f32.mrf.mxu0
    %v539 = vadd.f32 %v136, %v538
    %v540 = vpop.f32.mrf.mxu0
    %v541 = vadd.f32 %v136, %v540
    %542 = vmatmul.bf16.gmra.mxu0 %v162
    %v543 = vpop.f32.mrf.mxu0
    %v544 = vadd.f32 %v136, %v543
    %v545 = vpop.f32.mrf.mxu0
    %v546 = vadd.f32 %v136, %v545
    %547 = vmatmul.bf16.gmra.mxu0 %v163
    %v548 = vpop.f32.mrf.mxu0
    %v549 = vadd.f32 %v136, %v548
    %v550 = vpop.f32.mrf.mxu0
    %v551 = vadd.f32 %v136, %v550
    %552 = vdwg.mxu0
    %553 = vmatpush.bf16.msra.mxu0 %v359
    %554 = vmatpush.bf16.msra.mxu0 %v353
    %555 = vmatpush.bf16.msra.mxu0 %v347
    %556 = vmatpush.bf16.msra.mxu0 %v341
    %557 = vmatpush.bf16.msra.mxu0 %v335
    %558 = vmatpush.bf16.msra.mxu0 %v329
    %559 = vmatpush.bf16.msra.mxu0 %v323
    %560 = vmatpush.bf16.msra.mxu0 %v317
    %561 = vmatmul.bf16.gmra.mxu0 %v160
    %v562 = vpop.f32.mrf.mxu0
    %v563 = vadd.f32 %v137, %v562
    %v564 = vpop.f32.mrf.mxu0
    %v565 = vadd.f32 %v137, %v564
    %566 = vmatmul.bf16.gmra.mxu0 %v161
    %v567 = vpop.f32.mrf.mxu0
    %v568 = vadd.f32 %v137, %v567
    %v569 = vpop.f32.mrf.mxu0
    %v570 = vadd.f32 %v137, %v569
    %571 = vmatmul.bf16.gmra.mxu0 %v162
    %v572 = vpop.f32.mrf.mxu0
    %v573 = vadd.f32 %v137, %v572
    %v574 = vpop.f32.mrf.mxu0
    %v575 = vadd.f32 %v137, %v574
    %576 = vmatmul.bf16.gmra.mxu0 %v163
    %v577 = vpop.f32.mrf.mxu0
    %v578 = vadd.f32 %v137, %v577
    %v579 = vpop.f32.mrf.mxu0
    %v580 = vadd.f32 %v137, %v579
    %581 = vdwg.mxu0
    %582 = vst [vmem:[#allocation2] sm:$0xff] %v418
    %583 = vst [vmem:[#allocation2 + $0x8] sm:$0xff] %v447
    %584 = vst [vmem:[#allocation2 + $0x10] sm:$0xff] %v476
    %585 = vst [vmem:[#allocation2 + $0x18] sm:$0xff] %v505
    %586 = vst [vmem:[#allocation2 + $0x20] sm:$0xff] %v534
    %587 = vst [vmem:[#allocation2 + $0x28] sm:$0xff] %v563
    %588 = vst [vmem:[#allocation2 + $0x30] sm:$0xff] %v420
    %589 = vst [vmem:[#allocation2 + $0x38] sm:$0xff] %v449
    %590 = vst [vmem:[#allocation2 + $0x40] sm:$0xff] %v478
    %591 = vst [vmem:[#allocation2 + $0x48] sm:$0xff] %v507
    %592 = vst [vmem:[#allocation2 + $0x50] sm:$0xff] %v536
    %593 = vst [vmem:[#allocation2 + $0x58] sm:$0xff] %v565
    %594 = vst [vmem:[#allocation2 + $0x60] sm:$0xff] %v423
    %595 = vst [vmem:[#allocation2 + $0x68] sm:$0xff] %v452
    %596 = vst [vmem:[#allocation2 + $0x70] sm:$0xff] %v481
    %597 = vst [vmem:[#allocation2 + $0x78] sm:$0xff] %v510
    %598 = vst [vmem:[#allocation2 + $0x80] sm:$0xff] %v539
    %599 = vst [vmem:[#allocation2 + $0x88] sm:$0xff] %v568
    %600 = vst [vmem:[#allocation2 + $0x90] sm:$0xff] %v425
    %601 = vst [vmem:[#allocation2 + $0x98] sm:$0xff] %v454
    %602 = vst [vmem:[#allocation2 + $0xa0] sm:$0xff] %v483
    %603 = vst [vmem:[#allocation2 + $0xa8] sm:$0xff] %v512
    %604 = vst [vmem:[#allocation2 + $0xb0] sm:$0xff] %v541
    %605 = vst [vmem:[#allocation2 + $0xb8] sm:$0xff] %v570
    %606 = vst [vmem:[#allocation2 + $0xc0] sm:$0xff] %v428
    %607 = vst [vmem:[#allocation2 + $0xc8] sm:$0xff] %v457
    %608 = vst [vmem:[#allocation2 + $0xd0] sm:$0xff] %v486
    %609 = vst [vmem:[#allocation2 + $0xd8] sm:$0xff] %v515
    %610 = vst [vmem:[#allocation2 + $0xe0] sm:$0xff] %v544
    %611 = vst [vmem:[#allocation2 + $0xe8] sm:$0xff] %v573
    %612 = vst [vmem:[#allocation2 + $0xf0] sm:$0xff] %v430
    %613 = vst [vmem:[#allocation2 + $0xf8] sm:$0xff] %v459
    %614 = vst [vmem:[#allocation2 + $0x100] sm:$0xff] %v488
    %615 = vst [vmem:[#allocation2 + $0x108] sm:$0xff] %v517
    %616 = vst [vmem:[#allocation2 + $0x110] sm:$0xff] %v546
    %617 = vst [vmem:[#allocation2 + $0x118] sm:$0xff] %v575
    %618 = vst [vmem:[#allocation2 + $0x120] sm:$0xff] %v433
    %619 = vst [vmem:[#allocation2 + $0x128] sm:$0xff] %v462
    %620 = vst [vmem:[#allocation2 + $0x130] sm:$0xff] %v491
    %621 = vst [vmem:[#allocation2 + $0x138] sm:$0xff] %v520
    %622 = vst [vmem:[#allocation2 + $0x140] sm:$0xff] %v549
    %623 = vst [vmem:[#allocation2 + $0x148] sm:$0xff] %v578
    %624 = vst [vmem:[#allocation2 + $0x150] sm:$0xff] %v435
    %625 = vst [vmem:[#allocation2 + $0x158] sm:$0xff] %v464
    %626 = vst [vmem:[#allocation2 + $0x160] sm:$0xff] %v493
    %627 = vst [vmem:[#allocation2 + $0x168] sm:$0xff] %v522
    %628 = vst [vmem:[#allocation2 + $0x170] sm:$0xff] %v551
    %629 = vst [vmem:[#allocation2 + $0x178] sm:$0xff] %v580
    %v630 = vld [vmem:[%s1] sm:$0xff]
    %v631 = vld [vmem:[%s6] sm:$0x3]
    %v633 = vperm.slane %v631, 0
    %v634 = vperm.slane %v631, 1
    %s637 = sld [smem:[#allocation4]]
    // While loop
    $region38: #{tpu_custom_call.1} parent=1 // loop_pre_header
      _
    $region39: #{tpu_custom_call.1} parent=1 // loop_header
      %s639 = sphi 0, %s641
      %p640 = scmp.ge.s32.totalorder %s639, %s637
      %v644 = vphi 0.0, %v1501
      %v645 = vphi 0.0, %v1502
      %v646 = vphi 0, %v1503
    $region40: #{tpu_custom_call.1} parent=1 // loop_header_branch
      %643 = sbr.rel (%p640) target = $region44
    $region41: #{tpu_custom_call.1} parent=1 // loop_body
      %v647 = vld [vmem:[#allocation10] sm:$0xff]
      %v648 = vld [vmem:[#allocation10 + $0x8] sm:$0xff]
      %v649 = vld [vmem:[#allocation10 + $0x10] sm:$0xff]
      %v650 = vld [vmem:[#allocation10 + $0x18] sm:$0xff]
      %v651 = vld [vmem:[#allocation10 + $0x20] sm:$0xff]
      %v652 = vld [vmem:[#allocation10 + $0x28] sm:$0xff]
      %v653 = vld [vmem:[#allocation10 + $0x30] sm:$0xff]
      %v654 = vld [vmem:[#allocation10 + $0x38] sm:$0xff]
      %v655 = vld [vmem:[#allocation10 + $0x40] sm:$0xff]
      %v656 = vld [vmem:[#allocation10 + $0x48] sm:$0xff]
      %v657 = vld [vmem:[#allocation10 + $0x50] sm:$0xff]
      %v658 = vld [vmem:[#allocation10 + $0x58] sm:$0xff]
      %v659 = vld [vmem:[#allocation10 + $0x60] sm:$0xff]
      %v660 = vld [vmem:[#allocation10 + $0x68] sm:$0xff]
      %v661 = vld [vmem:[#allocation10 + $0x70] sm:$0xff]
      %v662 = vld [vmem:[#allocation10 + $0x78] sm:$0xff]
      %v663 = vld [vmem:[#allocation10 + $0x80] sm:$0xff]
      %v664 = vld [vmem:[#allocation10 + $0x88] sm:$0xff]
      %v665 = vld [vmem:[#allocation10 + $0x90] sm:$0xff]
      %v666 = vld [vmem:[#allocation10 + $0x98] sm:$0xff]
      %v667 = vld [vmem:[#allocation10 + $0xa0] sm:$0xff]
      %v668 = vld [vmem:[#allocation10 + $0xa8] sm:$0xff]
      %v669 = vld [vmem:[#allocation10 + $0xb0] sm:$0xff]
      %v670 = vld [vmem:[#allocation10 + $0xb8] sm:$0xff]
      %v671 = vld [vmem:[#allocation10 + $0xc0] sm:$0xff]
      %v672 = vld [vmem:[#allocation10 + $0xc8] sm:$0xff]
      %v673 = vld [vmem:[#allocation10 + $0xd0] sm:$0xff]
      %v674 = vld [vmem:[#allocation10 + $0xd8] sm:$0xff]
      %v675 = vld [vmem:[#allocation10 + $0xe0] sm:$0xff]
      %v676 = vld [vmem:[#allocation10 + $0xe8] sm:$0xff]
      %v677 = vld [vmem:[#allocation10 + $0xf0] sm:$0xff]
      %v678 = vld [vmem:[#allocation10 + $0xf8] sm:$0xff]
      %v679 = vld [vmem:[#allocation10 + $0x100] sm:$0xff]
      %v680 = vld [vmem:[#allocation10 + $0x108] sm:$0xff]
      %v681 = vld [vmem:[#allocation10 + $0x110] sm:$0xff]
      %v682 = vld [vmem:[#allocation10 + $0x118] sm:$0xff]
      %v683 = vld [vmem:[#allocation10 + $0x120] sm:$0xff]
      %v684 = vld [vmem:[#allocation10 + $0x128] sm:$0xff]
      %v685 = vld [vmem:[#allocation10 + $0x130] sm:$0xff]
      %v686 = vld [vmem:[#allocation10 + $0x138] sm:$0xff]
      %v687 = vld [vmem:[#allocation10 + $0x140] sm:$0xff]
      %v688 = vld [vmem:[#allocation10 + $0x148] sm:$0xff]
      %v689 = vld [vmem:[#allocation10 + $0x150] sm:$0xff]
      %v690 = vld [vmem:[#allocation10 + $0x158] sm:$0xff]
      %v691 = vld [vmem:[#allocation10 + $0x160] sm:$0xff]
      %v692 = vld [vmem:[#allocation10 + $0x168] sm:$0xff]
      %v693 = vld [vmem:[#allocation10 + $0x170] sm:$0xff]
      %v694 = vld [vmem:[#allocation10 + $0x178] sm:$0xff]
      %v695 = vld [vmem:[#allocation10 + $0x180] sm:$0xff]
      %v696 = vld [vmem:[#allocation10 + $0x188] sm:$0xff]
      %v697 = vld [vmem:[#allocation10 + $0x190] sm:$0xff]
      %v698 = vld [vmem:[#allocation10 + $0x198] sm:$0xff]
      %v699 = vld [vmem:[#allocation10 + $0x1a0] sm:$0xff]
      %v700 = vld [vmem:[#allocation10 + $0x1a8] sm:$0xff]
      %v701 = vld [vmem:[#allocation10 + $0x1b0] sm:$0xff]
      %v702 = vld [vmem:[#allocation10 + $0x1b8] sm:$0xff]
      %v703 = vld [vmem:[#allocation10 + $0x1c0] sm:$0xff]
      %v704 = vld [vmem:[#allocation10 + $0x1c8] sm:$0xff]
      %v705 = vld [vmem:[#allocation10 + $0x1d0] sm:$0xff]
      %v706 = vld [vmem:[#allocation10 + $0x1d8] sm:$0xff]
      %v707 = vld [vmem:[#allocation10 + $0x1e0] sm:$0xff]
      %v708 = vld [vmem:[#allocation10 + $0x1e8] sm:$0xff]
      %v709 = vld [vmem:[#allocation10 + $0x1f0] sm:$0xff]
      %v710 = vld [vmem:[#allocation10 + $0x1f8] sm:$0xff]
      %v711 = vld [vmem:[#allocation10 + $0x200] sm:$0xff]
      %v712 = vld [vmem:[#allocation10 + $0x208] sm:$0xff]
      %v713 = vld [vmem:[#allocation10 + $0x210] sm:$0xff]
      %v714 = vld [vmem:[#allocation10 + $0x218] sm:$0xff]
      %v715 = vld [vmem:[#allocation10 + $0x220] sm:$0xff]
      %v716 = vld [vmem:[#allocation10 + $0x228] sm:$0xff]
      %v717 = vld [vmem:[#allocation10 + $0x230] sm:$0xff]
      %v718 = vld [vmem:[#allocation10 + $0x238] sm:$0xff]
      %v719 = vld [vmem:[#allocation10 + $0x240] sm:$0xff]
      %v720 = vld [vmem:[#allocation10 + $0x248] sm:$0xff]
      %v721 = vld [vmem:[#allocation10 + $0x250] sm:$0xff]
      %v722 = vld [vmem:[#allocation10 + $0x258] sm:$0xff]
      %v723 = vld [vmem:[#allocation10 + $0x260] sm:$0xff]
      %v724 = vld [vmem:[#allocation10 + $0x268] sm:$0xff]
      %v725 = vld [vmem:[#allocation10 + $0x270] sm:$0xff]
      %v726 = vld [vmem:[#allocation10 + $0x278] sm:$0xff]
      %v727 = vld [vmem:[#allocation10 + $0x280] sm:$0xff]
      %v728 = vld [vmem:[#allocation10 + $0x288] sm:$0xff]
      %v729 = vld [vmem:[#allocation10 + $0x290] sm:$0xff]
      %v730 = vld [vmem:[#allocation10 + $0x298] sm:$0xff]
      %v731 = vld [vmem:[#allocation10 + $0x2a0] sm:$0xff]
      %v732 = vld [vmem:[#allocation10 + $0x2a8] sm:$0xff]
      %v733 = vld [vmem:[#allocation10 + $0x2b0] sm:$0xff]
      %v734 = vld [vmem:[#allocation10 + $0x2b8] sm:$0xff]
      %v735 = vld [vmem:[#allocation10 + $0x2c0] sm:$0xff]
      %v736 = vld [vmem:[#allocation10 + $0x2c8] sm:$0xff]
      %v737 = vld [vmem:[#allocation10 + $0x2d0] sm:$0xff]
      %v738 = vld [vmem:[#allocation10 + $0x2d8] sm:$0xff]
      %v739 = vld [vmem:[#allocation10 + $0x2e0] sm:$0xff]
      %v740 = vld [vmem:[#allocation10 + $0x2e8] sm:$0xff]
      %v741 = vld [vmem:[#allocation10 + $0x2f0] sm:$0xff]
      %v742 = vld [vmem:[#allocation10 + $0x2f8] sm:$0xff]
      %v744 = vunpack.c.l.b16 %v646
      %v745 = vunpack.c.h.b16 %v646
      %v746 = vpack.c.b16 %v744, %v744
      %v747 = vpack.c.b16 %v745, %v745
      %v846 = vunpack.c.l.b16 %v647
      %v847 = vunpack.c.h.b16 %v647
      %v848 = vunpack.c.l.b16 %v648
      %v849 = vunpack.c.h.b16 %v648
      %v850 = vunpack.c.l.b16 %v649
      %v851 = vunpack.c.h.b16 %v649
      %v852 = vunpack.c.l.b16 %v650
      %v853 = vunpack.c.h.b16 %v650
      %v854 = vunpack.c.l.b16 %v651
      %v855 = vunpack.c.h.b16 %v651
      %v856 = vunpack.c.l.b16 %v652
      %v857 = vunpack.c.h.b16 %v652
      %v858 = vunpack.c.l.b16 %v653
      %v859 = vunpack.c.h.b16 %v653
      %v860 = vunpack.c.l.b16 %v654
      %v861 = vunpack.c.h.b16 %v654
      %v862 = vunpack.c.l.b16 %v655
      %v863 = vunpack.c.h.b16 %v655
      %v864 = vunpack.c.l.b16 %v656
      %v865 = vunpack.c.h.b16 %v656
      %v866 = vunpack.c.l.b16 %v657
      %v867 = vunpack.c.h.b16 %v657
      %v868 = vunpack.c.l.b16 %v658
      %v869 = vunpack.c.h.b16 %v658
      %v870 = vunpack.c.l.b16 %v659
      %v871 = vunpack.c.h.b16 %v659
      %v872 = vunpack.c.l.b16 %v660
      %v873 = vunpack.c.h.b16 %v660
      %v874 = vunpack.c.l.b16 %v661
      %v875 = vunpack.c.h.b16 %v661
      %v876 = vunpack.c.l.b16 %v662
      %v877 = vunpack.c.h.b16 %v662
      %v878 = vunpack.c.l.b16 %v663
      %v879 = vunpack.c.h.b16 %v663
      %v880 = vunpack.c.l.b16 %v664
      %v881 = vunpack.c.h.b16 %v664
      %v882 = vunpack.c.l.b16 %v665
      %v883 = vunpack.c.h.b16 %v665
      %v884 = vunpack.c.l.b16 %v666
      %v885 = vunpack.c.h.b16 %v666
      %v886 = vunpack.c.l.b16 %v667
      %v887 = vunpack.c.h.b16 %v667
      %v888 = vunpack.c.l.b16 %v668
      %v889 = vunpack.c.h.b16 %v668
      %v890 = vunpack.c.l.b16 %v669
      %v891 = vunpack.c.h.b16 %v669
      %v892 = vunpack.c.l.b16 %v670
      %v893 = vunpack.c.h.b16 %v670
      %v894 = vunpack.c.l.b16 %v671
      %v895 = vunpack.c.h.b16 %v671
      %v896 = vunpack.c.l.b16 %v672
      %v897 = vunpack.c.h.b16 %v672
      %v898 = vunpack.c.l.b16 %v673
      %v899 = vunpack.c.h.b16 %v673
      %v900 = vunpack.c.l.b16 %v674
      %v901 = vunpack.c.h.b16 %v674
      %v902 = vunpack.c.l.b16 %v675
      %v903 = vunpack.c.h.b16 %v675
      %v904 = vunpack.c.l.b16 %v676
      %v905 = vunpack.c.h.b16 %v676
      %v906 = vunpack.c.l.b16 %v677
      %v907 = vunpack.c.h.b16 %v677
      %v908 = vunpack.c.l.b16 %v678
      %v909 = vunpack.c.h.b16 %v678
      %v910 = vunpack.c.l.b16 %v679
      %v911 = vunpack.c.h.b16 %v679
      %v912 = vunpack.c.l.b16 %v680
      %v913 = vunpack.c.h.b16 %v680
      %v914 = vunpack.c.l.b16 %v681
      %v915 = vunpack.c.h.b16 %v681
      %v916 = vunpack.c.l.b16 %v682
      %v917 = vunpack.c.h.b16 %v682
      %v918 = vunpack.c.l.b16 %v683
      %v919 = vunpack.c.h.b16 %v683
      %v920 = vunpack.c.l.b16 %v684
      %v921 = vunpack.c.h.b16 %v684
      %v922 = vunpack.c.l.b16 %v685
      %v923 = vunpack.c.h.b16 %v685
      %v924 = vunpack.c.l.b16 %v686
      %v925 = vunpack.c.h.b16 %v686
      %v926 = vunpack.c.l.b16 %v687
      %v927 = vunpack.c.h.b16 %v687
      %v928 = vunpack.c.l.b16 %v688
      %v929 = vunpack.c.h.b16 %v688
      %v930 = vunpack.c.l.b16 %v689
      %v931 = vunpack.c.h.b16 %v689
      %v932 = vunpack.c.l.b16 %v690
      %v933 = vunpack.c.h.b16 %v690
      %v934 = vunpack.c.l.b16 %v691
      %v935 = vunpack.c.h.b16 %v691
      %v936 = vunpack.c.l.b16 %v692
      %v937 = vunpack.c.h.b16 %v692
      %v938 = vunpack.c.l.b16 %v693
      %v939 = vunpack.c.h.b16 %v693
      %v940 = vunpack.c.l.b16 %v694
      %v941 = vunpack.c.h.b16 %v694
      %v942 = vunpack.c.l.b16 %v695
      %v943 = vunpack.c.h.b16 %v695
      %v944 = vunpack.c.l.b16 %v696
      %v945 = vunpack.c.h.b16 %v696
      %v946 = vunpack.c.l.b16 %v697
      %v947 = vunpack.c.h.b16 %v697
      %v948 = vunpack.c.l.b16 %v698
      %v949 = vunpack.c.h.b16 %v698
      %v950 = vunpack.c.l.b16 %v699
      %v951 = vunpack.c.h.b16 %v699
      %v952 = vunpack.c.l.b16 %v700
      %v953 = vunpack.c.h.b16 %v700
      %v954 = vunpack.c.l.b16 %v701
      %v955 = vunpack.c.h.b16 %v701
      %v956 = vunpack.c.l.b16 %v702
      %v957 = vunpack.c.h.b16 %v702
      %v958 = vunpack.c.l.b16 %v703
      %v959 = vunpack.c.h.b16 %v703
      %v960 = vunpack.c.l.b16 %v704
      %v961 = vunpack.c.h.b16 %v704
      %v962 = vunpack.c.l.b16 %v705
      %v963 = vunpack.c.h.b16 %v705
      %v964 = vunpack.c.l.b16 %v706
      %v965 = vunpack.c.h.b16 %v706
      %v966 = vunpack.c.l.b16 %v707
      %v967 = vunpack.c.h.b16 %v707
      %v968 = vunpack.c.l.b16 %v708
      %v969 = vunpack.c.h.b16 %v708
      %v970 = vunpack.c.l.b16 %v709
      %v971 = vunpack.c.h.b16 %v709
      %v972 = vunpack.c.l.b16 %v710
      %v973 = vunpack.c.h.b16 %v710
      %v974 = vunpack.c.l.b16 %v711
      %v975 = vunpack.c.h.b16 %v711
      %v976 = vunpack.c.l.b16 %v712
      %v977 = vunpack.c.h.b16 %v712
      %v978 = vunpack.c.l.b16 %v713
      %v979 = vunpack.c.h.b16 %v713
      %v980 = vunpack.c.l.b16 %v714
      %v981 = vunpack.c.h.b16 %v714
      %v982 = vunpack.c.l.b16 %v715
      %v983 = vunpack.c.h.b16 %v715
      %v984 = vunpack.c.l.b16 %v716
      %v985 = vunpack.c.h.b16 %v716
      %v986 = vunpack.c.l.b16 %v717
      %v987 = vunpack.c.h.b16 %v717
      %v988 = vunpack.c.l.b16 %v718
      %v989 = vunpack.c.h.b16 %v718
      %v990 = vunpack.c.l.b16 %v719
      %v991 = vunpack.c.h.b16 %v719
      %v992 = vunpack.c.l.b16 %v720
      %v993 = vunpack.c.h.b16 %v720
      %v994 = vunpack.c.l.b16 %v721
      %v995 = vunpack.c.h.b16 %v721
      %v996 = vunpack.c.l.b16 %v722
      %v997 = vunpack.c.h.b16 %v722
      %v998 = vunpack.c.l.b16 %v723
      %v999 = vunpack.c.h.b16 %v723
      %v1000 = vunpack.c.l.b16 %v724
      %v1001 = vunpack.c.h.b16 %v724
      %v1002 = vunpack.c.l.b16 %v725
      %v1003 = vunpack.c.h.b16 %v725
      %v1004 = vunpack.c.l.b16 %v726
      %v1005 = vunpack.c.h.b16 %v726
      %v1006 = vunpack.c.l.b16 %v727
      %v1007 = vunpack.c.h.b16 %v727
      %v1008 = vunpack.c.l.b16 %v728
      %v1009 = vunpack.c.h.b16 %v728
      %v1010 = vunpack.c.l.b16 %v729
      %v1011 = vunpack.c.h.b16 %v729
      %v1012 = vunpack.c.l.b16 %v730
      %v1013 = vunpack.c.h.b16 %v730
      %v1014 = vunpack.c.l.b16 %v731
      %v1015 = vunpack.c.h.b16 %v731
      %v1016 = vunpack.c.l.b16 %v732
      %v1017 = vunpack.c.h.b16 %v732
      %v1018 = vunpack.c.l.b16 %v733
      %v1019 = vunpack.c.h.b16 %v733
      %v1020 = vunpack.c.l.b16 %v734
      %v1021 = vunpack.c.h.b16 %v734
      %v1022 = vunpack.c.l.b16 %v735
      %v1023 = vunpack.c.h.b16 %v735
      %v1024 = vunpack.c.l.b16 %v736
      %v1025 = vunpack.c.h.b16 %v736
      %v1026 = vunpack.c.l.b16 %v737
      %v1027 = vunpack.c.h.b16 %v737
      %v1028 = vunpack.c.l.b16 %v738
      %v1029 = vunpack.c.h.b16 %v738
      %v1030 = vunpack.c.l.b16 %v739
      %v1031 = vunpack.c.h.b16 %v739
      %v1032 = vunpack.c.l.b16 %v740
      %v1033 = vunpack.c.h.b16 %v740
      %v1034 = vunpack.c.l.b16 %v741
      %v1035 = vunpack.c.h.b16 %v741
      %v1036 = vunpack.c.l.b16 %v742
      %v1037 = vunpack.c.h.b16 %v742
      %v1038 = vpack.c.b16 %v852, %v846
      %v1039 = vpack.c.b16 %v853, %v847
      %v1040 = vpack.c.b16 %v854, %v848
      %v1041 = vpack.c.b16 %v855, %v849
      %v1042 = vpack.c.b16 %v856, %v850
      %v1043 = vpack.c.b16 %v857, %v851
      %v1044 = vpack.c.b16 %v864, %v858
      %v1045 = vpack.c.b16 %v865, %v859
      %v1046 = vpack.c.b16 %v866, %v860
      %v1047 = vpack.c.b16 %v867, %v861
      %v1048 = vpack.c.b16 %v868, %v862
      %v1049 = vpack.c.b16 %v869, %v863
      %v1050 = vpack.c.b16 %v876, %v870
      %v1051 = vpack.c.b16 %v877, %v871
      %v1052 = vpack.c.b16 %v878, %v872
      %v1053 = vpack.c.b16 %v879, %v873
      %v1054 = vpack.c.b16 %v880, %v874
      %v1055 = vpack.c.b16 %v881, %v875
      %v1056 = vpack.c.b16 %v888, %v882
      %v1057 = vpack.c.b16 %v889, %v883
      %v1058 = vpack.c.b16 %v890, %v884
      %v1059 = vpack.c.b16 %v891, %v885
      %v1060 = vpack.c.b16 %v892, %v886
      %v1061 = vpack.c.b16 %v893, %v887
      %v1062 = vpack.c.b16 %v900, %v894
      %v1063 = vpack.c.b16 %v901, %v895
      %v1064 = vpack.c.b16 %v902, %v896
      %v1065 = vpack.c.b16 %v903, %v897
      %v1066 = vpack.c.b16 %v904, %v898
      %v1067 = vpack.c.b16 %v905, %v899
      %v1068 = vpack.c.b16 %v912, %v906
      %v1069 = vpack.c.b16 %v913, %v907
      %v1070 = vpack.c.b16 %v914, %v908
      %v1071 = vpack.c.b16 %v915, %v909
      %v1072 = vpack.c.b16 %v916, %v910
      %v1073 = vpack.c.b16 %v917, %v911
      %v1074 = vpack.c.b16 %v924, %v918
      %v1075 = vpack.c.b16 %v925, %v919
      %v1076 = vpack.c.b16 %v926, %v920
      %v1077 = vpack.c.b16 %v927, %v921
      %v1078 = vpack.c.b16 %v928, %v922
      %v1079 = vpack.c.b16 %v929, %v923
      %v1080 = vpack.c.b16 %v936, %v930
      %v1081 = vpack.c.b16 %v937, %v931
      %v1082 = vpack.c.b16 %v938, %v932
      %v1083 = vpack.c.b16 %v939, %v933
      %v1084 = vpack.c.b16 %v940, %v934
      %v1085 = vpack.c.b16 %v941, %v935
      %v1086 = vpack.c.b16 %v948, %v942
      %v1087 = vpack.c.b16 %v949, %v943
      %v1088 = vpack.c.b16 %v950, %v944
      %v1089 = vpack.c.b16 %v951, %v945
      %v1090 = vpack.c.b16 %v952, %v946
      %v1091 = vpack.c.b16 %v953, %v947
      %v1092 = vpack.c.b16 %v960, %v954
      %v1093 = vpack.c.b16 %v961, %v955
      %v1094 = vpack.c.b16 %v962, %v956
      %v1095 = vpack.c.b16 %v963, %v957
      %v1096 = vpack.c.b16 %v964, %v958
      %v1097 = vpack.c.b16 %v965, %v959
      %v1098 = vpack.c.b16 %v972, %v966
      %v1099 = vpack.c.b16 %v973, %v967
      %v1100 = vpack.c.b16 %v974, %v968
      %v1101 = vpack.c.b16 %v975, %v969
      %v1102 = vpack.c.b16 %v976, %v970
      %v1103 = vpack.c.b16 %v977, %v971
      %v1104 = vpack.c.b16 %v984, %v978
      %v1105 = vpack.c.b16 %v985, %v979
      %v1106 = vpack.c.b16 %v986, %v980
      %v1107 = vpack.c.b16 %v987, %v981
      %v1108 = vpack.c.b16 %v988, %v982
      %v1109 = vpack.c.b16 %v989, %v983
      %v1110 = vpack.c.b16 %v996, %v990
      %v1111 = vpack.c.b16 %v997, %v991
      %v1112 = vpack.c.b16 %v998, %v992
      %v1113 = vpack.c.b16 %v999, %v993
      %v1114 = vpack.c.b16 %v1000, %v994
      %v1115 = vpack.c.b16 %v1001, %v995
      %v1116 = vpack.c.b16 %v1008, %v1002
      %v1117 = vpack.c.b16 %v1009, %v1003
      %v1118 = vpack.c.b16 %v1010, %v1004
      %v1119 = vpack.c.b16 %v1011, %v1005
      %v1120 = vpack.c.b16 %v1012, %v1006
      %v1121 = vpack.c.b16 %v1013, %v1007
      %v1122 = vpack.c.b16 %v1020, %v1014
      %v1123 = vpack.c.b16 %v1021, %v1015
      %v1124 = vpack.c.b16 %v1022, %v1016
      %v1125 = vpack.c.b16 %v1023, %v1017
      %v1126 = vpack.c.b16 %v1024, %v1018
      %v1127 = vpack.c.b16 %v1025, %v1019
      %v1128 = vpack.c.b16 %v1032, %v1026
      %v1129 = vpack.c.b16 %v1033, %v1027
      %v1130 = vpack.c.b16 %v1034, %v1028
      %v1131 = vpack.c.b16 %v1035, %v1029
      %v1132 = vpack.c.b16 %v1036, %v1030
      %v1133 = vpack.c.b16 %v1037, %v1031
      %1230 = vmatpush.bf16.msra.mxu0 %v1080
      %1231 = vmatpush.bf16.msra.mxu0 %v1074
      %1232 = vmatpush.bf16.msra.mxu0 %v1068
      %1233 = vmatpush.bf16.msra.mxu0 %v1062
      %1234 = vmatpush.bf16.msra.mxu0 %v1056
      %1235 = vmatpush.bf16.msra.mxu0 %v1050
      %1236 = vmatpush.bf16.msra.mxu0 %v1044
      %1237 = vmatpush.bf16.msra.mxu0 %v1038
      %1238 = vmatmul.bf16.gmra.mxu0 %v746
      %v1239 = vpop.f32.mrf.mxu0
      %v1240 = vadd.f32 0.0, %v1239
      %v1241 = vpop.f32.mrf.mxu0
      %1242 = vdwg.mxu0
      %1243 = vmatpush.bf16.msra.mxu0 %v1128
      %1244 = vmatpush.bf16.msra.mxu0 %v1122
      %1245 = vmatpush.bf16.msra.mxu0 %v1116
      %1246 = vmatpush.bf16.msra.mxu0 %v1110
      %1247 = vmatpush.bf16.msra.mxu0 %v1104
      %1248 = vmatpush.bf16.msra.mxu0 %v1098
      %1249 = vmatpush.bf16.msra.mxu0 %v1092
      %1250 = vmatpush.bf16.msra.mxu0 %v1086
      %1251 = vmatmul.bf16.gmra.mxu0 %v747
      %v1252 = vpop.f32.mrf.mxu0
      %v1253 = vadd.f32 %v1240, %v1252
      %v1254 = vpop.f32.mrf.mxu0
      %1255 = vdwg.mxu0
      %1256 = vmatpush.bf16.msra.mxu0 %v1081
      %1257 = vmatpush.bf16.msra.mxu0 %v1075
      %1258 = vmatpush.bf16.msra.mxu0 %v1069
      %1259 = vmatpush.bf16.msra.mxu0 %v1063
      %1260 = vmatpush.bf16.msra.mxu0 %v1057
      %1261 = vmatpush.bf16.msra.mxu0 %v1051
      %1262 = vmatpush.bf16.msra.mxu0 %v1045
      %1263 = vmatpush.bf16.msra.mxu0 %v1039
      %1264 = vmatmul.bf16.gmra.mxu0 %v746
      %v1265 = vpop.f32.mrf.mxu0
      %v1266 = vadd.f32 0.0, %v1265
      %v1267 = vpop.f32.mrf.mxu0
      %1268 = vdwg.mxu0
      %1269 = vmatpush.bf16.msra.mxu0 %v1129
      %1270 = vmatpush.bf16.msra.mxu0 %v1123
      %1271 = vmatpush.bf16.msra.mxu0 %v1117
      %1272 = vmatpush.bf16.msra.mxu0 %v1111
      %1273 = vmatpush.bf16.msra.mxu0 %v1105
      %1274 = vmatpush.bf16.msra.mxu0 %v1099
      %1275 = vmatpush.bf16.msra.mxu0 %v1093
      %1276 = vmatpush.bf16.msra.mxu0 %v1087
      %1277 = vmatmul.bf16.gmra.mxu0 %v747
      %v1278 = vpop.f32.mrf.mxu0
      %v1279 = vadd.f32 %v1266, %v1278
      %v1280 = vpop.f32.mrf.mxu0
      %1281 = vdwg.mxu0
      %1282 = vmatpush.bf16.msra.mxu0 %v1082
      %1283 = vmatpush.bf16.msra.mxu0 %v1076
      %1284 = vmatpush.bf16.msra.mxu0 %v1070
      %1285 = vmatpush.bf16.msra.mxu0 %v1064
      %1286 = vmatpush.bf16.msra.mxu0 %v1058
      %1287 = vmatpush.bf16.msra.mxu0 %v1052
      %1288 = vmatpush.bf16.msra.mxu0 %v1046
      %1289 = vmatpush.bf16.msra.mxu0 %v1040
      %1290 = vmatmul.bf16.gmra.mxu0 %v746
      %v1291 = vpop.f32.mrf.mxu0
      %v1292 = vadd.f32 0.0, %v1291
      %v1293 = vpop.f32.mrf.mxu0
      %1294 = vdwg.mxu0
      %1295 = vmatpush.bf16.msra.mxu0 %v1130
      %1296 = vmatpush.bf16.msra.mxu0 %v1124
      %1297 = vmatpush.bf16.msra.mxu0 %v1118
      %1298 = vmatpush.bf16.msra.mxu0 %v1112
      %1299 = vmatpush.bf16.msra.mxu0 %v1106
      %1300 = vmatpush.bf16.msra.mxu0 %v1100
      %1301 = vmatpush.bf16.msra.mxu0 %v1094
      %1302 = vmatpush.bf16.msra.mxu0 %v1088
      %1303 = vmatmul.bf16.gmra.mxu0 %v747
      %v1304 = vpop.f32.mrf.mxu0
      %v1305 = vadd.f32 %v1292, %v1304
      %v1306 = vpop.f32.mrf.mxu0
      %1307 = vdwg.mxu0
      %1308 = vmatpush.bf16.msra.mxu0 %v1083
      %1309 = vmatpush.bf16.msra.mxu0 %v1077
      %1310 = vmatpush.bf16.msra.mxu0 %v1071
      %1311 = vmatpush.bf16.msra.mxu0 %v1065
      %1312 = vmatpush.bf16.msra.mxu0 %v1059
      %1313 = vmatpush.bf16.msra.mxu0 %v1053
      %1314 = vmatpush.bf16.msra.mxu0 %v1047
      %1315 = vmatpush.bf16.msra.mxu0 %v1041
      %1316 = vmatmul.bf16.gmra.mxu0 %v746
      %v1317 = vpop.f32.mrf.mxu0
      %v1318 = vadd.f32 0.0, %v1317
      %v1319 = vpop.f32.mrf.mxu0
      %1320 = vdwg.mxu0
      %1321 = vmatpush.bf16.msra.mxu0 %v1131
      %1322 = vmatpush.bf16.msra.mxu0 %v1125
      %1323 = vmatpush.bf16.msra.mxu0 %v1119
      %1324 = vmatpush.bf16.msra.mxu0 %v1113
      %1325 = vmatpush.bf16.msra.mxu0 %v1107
      %1326 = vmatpush.bf16.msra.mxu0 %v1101
      %1327 = vmatpush.bf16.msra.mxu0 %v1095
      %1328 = vmatpush.bf16.msra.mxu0 %v1089
      %1329 = vmatmul.bf16.gmra.mxu0 %v747
      %v1330 = vpop.f32.mrf.mxu0
      %v1331 = vadd.f32 %v1318, %v1330
      %v1332 = vpop.f32.mrf.mxu0
      %1333 = vdwg.mxu0
      %1334 = vmatpush.bf16.msra.mxu0 %v1084
      %1335 = vmatpush.bf16.msra.mxu0 %v1078
      %1336 = vmatpush.bf16.msra.mxu0 %v1072
      %1337 = vmatpush.bf16.msra.mxu0 %v1066
      %1338 = vmatpush.bf16.msra.mxu0 %v1060
      %1339 = vmatpush.bf16.msra.mxu0 %v1054
      %1340 = vmatpush.bf16.msra.mxu0 %v1048
      %1341 = vmatpush.bf16.msra.mxu0 %v1042
      %1342 = vmatmul.bf16.gmra.mxu0 %v746
      %v1343 = vpop.f32.mrf.mxu0
      %v1344 = vadd.f32 0.0, %v1343
      %v1345 = vpop.f32.mrf.mxu0
      %1346 = vdwg.mxu0
      %1347 = vmatpush.bf16.msra.mxu0 %v1132
      %1348 = vmatpush.bf16.msra.mxu0 %v1126
      %1349 = vmatpush.bf16.msra.mxu0 %v1120
      %1350 = vmatpush.bf16.msra.mxu0 %v1114
      %1351 = vmatpush.bf16.msra.mxu0 %v1108
      %1352 = vmatpush.bf16.msra.mxu0 %v1102
      %1353 = vmatpush.bf16.msra.mxu0 %v1096
      %1354 = vmatpush.bf16.msra.mxu0 %v1090
      %1355 = vmatmul.bf16.gmra.mxu0 %v747
      %v1356 = vpop.f32.mrf.mxu0
      %v1357 = vadd.f32 %v1344, %v1356
      %v1358 = vpop.f32.mrf.mxu0
      %1359 = vdwg.mxu0
      %1360 = vmatpush.bf16.msra.mxu0 %v1085
      %1361 = vmatpush.bf16.msra.mxu0 %v1079
      %1362 = vmatpush.bf16.msra.mxu0 %v1073
      %1363 = vmatpush.bf16.msra.mxu0 %v1067
      %1364 = vmatpush.bf16.msra.mxu0 %v1061
      %1365 = vmatpush.bf16.msra.mxu0 %v1055
      %1366 = vmatpush.bf16.msra.mxu0 %v1049
      %1367 = vmatpush.bf16.msra.mxu0 %v1043
      %1368 = vmatmul.bf16.gmra.mxu0 %v746
      %v1369 = vpop.f32.mrf.mxu0
      %v1370 = vadd.f32 0.0, %v1369
      %v1371 = vpop.f32.mrf.mxu0
      %1372 = vdwg.mxu0
      %1373 = vmatpush.bf16.msra.mxu0 %v1133
      %1374 = vmatpush.bf16.msra.mxu0 %v1127
      %1375 = vmatpush.bf16.msra.mxu0 %v1121
      %1376 = vmatpush.bf16.msra.mxu0 %v1115
      %1377 = vmatpush.bf16.msra.mxu0 %v1109
      %1378 = vmatpush.bf16.msra.mxu0 %v1103
      %1379 = vmatpush.bf16.msra.mxu0 %v1097
      %1380 = vmatpush.bf16.msra.mxu0 %v1091
      %1381 = vmatmul.bf16.gmra.mxu0 %v747
      %v1382 = vpop.f32.mrf.mxu0
      %v1383 = vadd.f32 %v1370, %v1382
      %v1384 = vpop.f32.mrf.mxu0
      %1385 = vdwg.mxu0
      %s1386 = smul.u32 %s639, 8
      %s1387 = sshra.s32 %s1386, 3
      %s1388 = sand.u32 %s1386, 7
      %s1389 = smul.u32 %s1387, 6
      %s1390 = smul.addr %s1389, 8
      %s1391 = scalar_lea.vmem [#allocation2], %s1390
      %v1392 = vld [vmem:[%s1391] sm:$0xff]
      %v1393 = vld [vmem:[%s1391 + $0x8] sm:$0xff]
      %v1394 = vld [vmem:[%s1391 + $0x10] sm:$0xff]
      %v1395 = vld [vmem:[%s1391 + $0x18] sm:$0xff]
      %v1396 = vld [vmem:[%s1391 + $0x20] sm:$0xff]
      %v1397 = vld [vmem:[%s1391 + $0x28] sm:$0xff]
      %v1398 = vadd.f32 %v1392, %v1253
      %v1399 = vadd.f32 %v1393, %v1279
      %v1400 = vxor.u32 %v1398, 2147483648
      %v1401 = vxor.u32 %v1399, 2147483648
      %v1402 = vmul.f32 %v1400, 1.442695
      %v1403 = vpow.pop %v1402
      %v1404 = vmul.f32 %v1401, 1.442695
      %v1405 = vpow.pop %v1404
      %v1406 = vadd.f32 %v1403, 1.0
      %v1407 = vadd.f32 %v1405, 1.0
      %v1408 = vrcp.pop %v1406
      %v1409 = vmul.f32 %v1406, %v1408
      %v1410 = vsub.f32 1.0, %v1409
      %v1411 = vmul.f32 %v1408, %v1410
      %v1412 = vadd.f32 %v1408, %v1411
      %vm1413 = vweird.f32 %v1406
      %vm1414 = vweird.f32 %v1408
      %vm1415 = vmor %vm1413, %vm1414
      %v1416 = vsel %vm1415, %v1408, %v1412
      %v1417 = vand.u32 2147483647, %v1406
      %vm1418 = vcmp.eq.f32.partialorder %v1417, 8.507059e+37
      %v1419 = vand.u32 %v1406, 2147483648
      %v1420 = vor.u32 1.1754944e-38, %v1419
      %v1421 = vsel %vm1418, %v1420, %v1416
      %v1422 = vmul.f32 1.0, %v1421
      %v1423 = vrcp.pop %v1407
      %v1424 = vmul.f32 %v1407, %v1423
      %v1425 = vsub.f32 1.0, %v1424
      %v1426 = vmul.f32 %v1423, %v1425
      %v1427 = vadd.f32 %v1423, %v1426
      %vm1428 = vweird.f32 %v1407
      %vm1429 = vweird.f32 %v1423
      %vm1430 = vmor %vm1428, %vm1429
      %v1431 = vsel %vm1430, %v1423, %v1427
      %v1432 = vand.u32 2147483647, %v1407
      %vm1433 = vcmp.eq.f32.partialorder %v1432, 8.507059e+37
      %v1434 = vand.u32 %v1407, 2147483648
      %v1435 = vor.u32 1.1754944e-38, %v1434
      %v1436 = vsel %vm1433, %v1435, %v1431
      %v1437 = vmul.f32 1.0, %v1436
      %v1438 = vadd.f32 %v1394, %v1305
      %v1439 = vadd.f32 %v1395, %v1331
      %v1440 = vxor.u32 %v1438, 2147483648
      %v1441 = vxor.u32 %v1439, 2147483648
      %v1442 = vmul.f32 %v1440, 1.442695
      %v1443 = vpow.pop %v1442
      %v1444 = vmul.f32 %v1441, 1.442695
      %v1445 = vpow.pop %v1444
      %v1446 = vadd.f32 %v1443, 1.0
      %v1447 = vadd.f32 %v1445, 1.0
      %v1448 = vrcp.pop %v1446
      %v1449 = vmul.f32 %v1446, %v1448
      %v1450 = vsub.f32 1.0, %v1449
      %v1451 = vmul.f32 %v1448, %v1450
      %v1452 = vadd.f32 %v1448, %v1451
      %vm1453 = vweird.f32 %v1446
      %vm1454 = vweird.f32 %v1448
      %vm1455 = vmor %vm1453, %vm1454
      %v1456 = vsel %vm1455, %v1448, %v1452
      %v1457 = vand.u32 2147483647, %v1446
      %vm1458 = vcmp.eq.f32.partialorder %v1457, 8.507059e+37
      %v1459 = vand.u32 %v1446, 2147483648
      %v1460 = vor.u32 1.1754944e-38, %v1459
      %v1461 = vsel %vm1458, %v1460, %v1456
      %v1462 = vmul.f32 1.0, %v1461
      %v1463 = vrcp.pop %v1447
      %v1464 = vmul.f32 %v1447, %v1463
      %v1465 = vsub.f32 1.0, %v1464
      %v1466 = vmul.f32 %v1463, %v1465
      %v1467 = vadd.f32 %v1463, %v1466
      %vm1468 = vweird.f32 %v1447
      %vm1469 = vweird.f32 %v1463
      %vm1470 = vmor %vm1468, %vm1469
      %v1471 = vsel %vm1470, %v1463, %v1467
      %v1472 = vand.u32 2147483647, %v1447
      %vm1473 = vcmp.eq.f32.partialorder %v1472, 8.507059e+37
      %v1474 = vand.u32 %v1447, 2147483648
      %v1475 = vor.u32 1.1754944e-38, %v1474
      %v1476 = vsel %vm1473, %v1475, %v1471
      %v1477 = vmul.f32 1.0, %v1476
      %v1478 = vadd.f32 %v1357, %v633
      %v1479 = vadd.f32 %v1383, %v634
      %v1480 = vmul.f32 %v1422, %v1478
      %v1481 = vmul.f32 %v1437, %v1479
      %v1482 = vadd.f32 %v1396, %v1480
      %v1483 = vadd.f32 %v1397, %v1481
      %v1484 = vtanh.pop %v1482
      %v1485 = vtanh.pop %v1483
      %v1486 = vsub.f32 1.0, %v1462
      %v1487 = vsub.f32 1.0, %v1477
      %v1488 = vmul.f32 %v1486, %v1484
      %v1489 = vmul.f32 %v1487, %v1485
      %v1490 = vmul.f32 %v1462, %v644
      %v1491 = vmul.f32 %v1477, %v645
      %v1492 = vadd.f32 %v1488, %v1490
      %v1493 = vadd.f32 %v1489, %v1491
      %v1494 = vstv %s639
      %vm1495 = vcmp.lt.s32.totalorder %v1494, %v630
      %v1496 = vsel %vm1495, 1, 0
      %1497 = vset.pattern.permute.xlu0 0
      %1498 = vperm.xlu0 %1497, %v1496
      %v1499 = vpop.permute.xlu0 %1498
      %vm1500 = vcmp.eq.s32.totalorder %v1499, 1
      %v1501 = vsel %vm1500, %v1492, %v644
      %v1502 = vsel %vm1500, %v1493, %v645
      %v1503 = vpack.c.bf16 %v1502, %v1501
    $region42: #{tpu_custom_call.1} parent=1 // loop_footer
      %s641 = sadd.s32 %s639, 1
    $region43: #{tpu_custom_call.1} parent=1 // loop_footer_branch
      %638 = sbr.rel target = $region39
    $region44: #{tpu_custom_call.1} parent=1 // loop_exit
      _
    %1504 = vst [vmem:[#allocation11] sm:$0xff] %v644
    %1505 = vst [vmem:[#allocation11 + $0x8] sm:$0xff] %v645
    // Predicated region
    $region45: #{tpu_custom_call.1} parent=1 // pred_check
      _
    $region46: #{tpu_custom_call.1} parent=1 // pred_check_branch
      %1507 = sbr.rel (0) target = $region48
    $region47: #{tpu_custom_call.1} parent=1 // pred_region
      %1509 = vsyncadd [#allocation7], 0
      %s1511 = sshll.u32 [#allocation11], 4
      %s1512 = int_to_ptr.vmem [resolvable:$true] %s1511
      %s1513 = sshll.u32 %s7, 4
      %s1514 = int_to_ptr.hbm [resolvable:$true] %s1513
      %1516 = dma.vmem_to_hbm [thread:$0]  %s1512, 256, %s1514, [#allocation7]
    $region48: #{tpu_custom_call.1} parent=1 // pred_fallthru
      _
    // Predicated region
    $region49: #{tpu_custom_call.1} parent=1 // pred_check
      _
    $region50: #{tpu_custom_call.1} parent=1 // pred_check_branch
      %1518 = sbr.rel (0) target = $region52
    $region51: #{tpu_custom_call.1} parent=1 // pred_region
      %1520 = dma.done [#allocation7], 256
    $region52: #{tpu_custom_call.1} parent=1 // pred_fallthru
      _
    %1521 = vsyncpa [#allocation6], 1
    %1522 = vsyncpa [#allocation9], 1
    %1523 = vsyncpa [#allocation7], 1

// kernel: tpu_custom_call.1
$region0: #{tpu_custom_call.1}
  #allocation0 [shape = 'u32[]', space=smem, size = 0x4, offset = 0x4, fixed_abs, tag = 'smem constant byte address 0x4 - core index']
  #allocation1 [shape = 'u32[72,128]{1,0:T(1,128)}', space=vmem, size = 0x9000, scoped, tag = 'internal scratch']
  #allocation2 [shape = 'f32[64,768]{1,0:T(8,128)}', space=vmem, size = 0x30000, scoped, tag = 'scratch operand']
  #allocation3 [shape = 's32[1]{0}', space=sflag, size = 0x4, scoped, tag = 'scoped memory for tpu_custom_call.1']
  #allocation4 [shape = 's32[1]{0:T(128)S(6)}', space=smem, size = 0x200, scoped, tag = 'prefetched SMEM operand 0']
  %s0 = inlined_call_operand.<no memory space> [shape: s32[1], index: 0, kind: input, shape index: {}]
  %s1 = inlined_call_operand.vmem [shape: s32[8,1], index: 1, kind: input, shape index: {}]
  %s2 = inlined_call_operand.hbm [shape: bf16[64,128], index: 2, kind: input, shape index: {}]
  %s3 = inlined_call_operand.hbm [shape: bf16[128,768], index: 3, kind: input, shape index: {}]
  %s4 = inlined_call_operand.hbm [shape: bf16[256,768], index: 4, kind: input, shape index: {}]
  %s5 = inlined_call_operand.vmem [shape: f32[1,768], index: 5, kind: input, shape index: {}]
  %s6 = inlined_call_operand.vmem [shape: f32[1,256], index: 6, kind: input, shape index: {}]
  %s7 = inlined_call_operand.hbm [shape: f32[8,256], index: 7, kind: output, shape index: {}]
  %s8 = sld [smem:[#allocation0]]
  $region53: #{tpu_custom_call.1} parent=0
    _
  %s10 = ssub.s32 1, %s8
  %s11 = scalar_select 0, %s10, %s8
  %12 = sst [smem:[#allocation4]] %s0
  $region1: #{tpu_custom_call.1} parent=0
    #allocation5 [shape = 'u8[16384]{0}', space=vmem, size = 0x4000, scoped, tag = 'input window, operand 2, single buffered']
    #allocation6 [shape = 's32[1]{0}', space=sflag, size = 0x4, scoped, tag = 'scoped memory for tpu_custom_call.1']
    #allocation7 [shape = 's32[1]{0}', space=sflag, size = 0x4, scoped, tag = 'scoped memory for tpu_custom_call.1']
    #allocation8 [shape = 'u8[196608]{0}', space=vmem, size = 0x30000, scoped, tag = 'input window, operand 3, single buffered']
    #allocation9 [shape = 's32[1]{0}', space=sflag, size = 0x4, scoped, tag = 'scoped memory for tpu_custom_call.1']
    #allocation10 [shape = 'u8[393216]{0}', space=vmem, size = 0x60000, scoped, tag = 'input window, operand 4, single buffered']
    #allocation11 [shape = 'u8[8192]{0}', space=vmem, size = 0x2000, scoped, tag = 'output window, operand 0, single buffered']
    %13 = vsyncpa [#allocation6], 0
    %14 = vsyncpa [#allocation9], 0
    %15 = vsyncpa [#allocation7], 0
    // Predicated region
    $region2: #{tpu_custom_call.1} parent=1 // pred_check
      _
    $region3: #{tpu_custom_call.1} parent=1 // pred_check_branch
      %17 = sbr.rel (0) target = $region5
    $region4: #{tpu_custom_call.1} parent=1 // pred_region
      _
    $region5: #{tpu_custom_call.1} parent=1 // pred_fallthru
      _
    // Predicated region
    $region6: #{tpu_custom_call.1} parent=1 // pred_check
      _
    $region7: #{tpu_custom_call.1} parent=1 // pred_check_branch
      %19 = sbr.rel (0) target = $region9
    $region8: #{tpu_custom_call.1} parent=1 // pred_region
      %21 = vsyncadd [#allocation6], 0
      %s22 = sshll.u32 %s2, 4
      %s23 = int_to_ptr.hbm [resolvable:$true] %s22
      %s24 = sshll.u32 [#allocation5], 4
      %s25 = int_to_ptr.vmem [resolvable:$true] %s24
      %30 = dma.hbm_to_vmem [thread:$0]  %s23, 512, %s25, [#allocation6], 64, 64, 4
    $region9: #{tpu_custom_call.1} parent=1 // pred_fallthru
      _
    // Predicated region
    $region10: #{tpu_custom_call.1} parent=1 // pred_check
      _
    $region11: #{tpu_custom_call.1} parent=1 // pred_check_branch
      %32 = sbr.rel (0) target = $region13
    $region12: #{tpu_custom_call.1} parent=1 // pred_region
      %34 = vsyncadd [#allocation9], 0
      %s35 = sshll.u32 %s3, 4
      %s36 = int_to_ptr.hbm [resolvable:$true] %s35
      %s37 = sshll.u32 [#allocation8], 4
      %s38 = int_to_ptr.vmem [resolvable:$true] %s37
      %43 = dma.hbm_to_vmem [thread:$0]  %s36, 6144, %s38, [#allocation9], 384, 384, 24
    $region13: #{tpu_custom_call.1} parent=1 // pred_fallthru
      _
    // Predicated region
    $region14: #{tpu_custom_call.1} parent=1 // pred_check
      _
    $region15: #{tpu_custom_call.1} parent=1 // pred_check_branch
      %45 = sbr.rel (0) target = $region17
    $region16: #{tpu_custom_call.1} parent=1 // pred_region
      %47 = vsyncadd [#allocation9], 0
      %s48 = sshll.u32 %s4, 4
      %s49 = int_to_ptr.hbm [resolvable:$true] %s48
      %s50 = sshll.u32 [#allocation10], 4
      %s51 = int_to_ptr.vmem [resolvable:$true] %s50
      %56 = dma.hbm_to_vmem [thread:$0]  %s49, 12288, %s51, [#allocation9], 384, 384, 24
    $region17: #{tpu_custom_call.1} parent=1 // pred_fallthru
      _
    // Predicated region
    $region18: #{tpu_custom_call.1} parent=1 // pred_check
      _
    $region19: #{tpu_custom_call.1} parent=1 // pred_check_branch
      %58 = sbr.rel (0) target = $region21
    $region20: #{tpu_custom_call.1} parent=1 // pred_region
      _
    $region21: #{tpu_custom_call.1} parent=1 // pred_fallthru
      _
    // Predicated region
    $region22: #{tpu_custom_call.1} parent=1 // pred_check
      _
    $region23: #{tpu_custom_call.1} parent=1 // pred_check_branch
      %60 = sbr.rel (0) target = $region25
    $region24: #{tpu_custom_call.1} parent=1 // pred_region
      _
    $region25: #{tpu_custom_call.1} parent=1 // pred_fallthru
      _
    // Predicated region
    $region26: #{tpu_custom_call.1} parent=1 // pred_check
      _
    $region27: #{tpu_custom_call.1} parent=1 // pred_check_branch
      %62 = sbr.rel (0) target = $region29
    $region28: #{tpu_custom_call.1} parent=1 // pred_region
      %64 = dma.done [#allocation6], 512
    $region29: #{tpu_custom_call.1} parent=1 // pred_fallthru
      _
    // Predicated region
    $region30: #{tpu_custom_call.1} parent=1 // pred_check
      _
    $region31: #{tpu_custom_call.1} parent=1 // pred_check_branch
      %66 = sbr.rel (0) target = $region33
    $region32: #{tpu_custom_call.1} parent=1 // pred_region
      %68 = dma.done [#allocation9], 6144
    $region33: #{tpu_custom_call.1} parent=1 // pred_fallthru
      _
    // Predicated region
    $region34: #{tpu_custom_call.1} parent=1 // pred_check
      _
    $region35: #{tpu_custom_call.1} parent=1 // pred_check_branch
      %70 = sbr.rel (0) target = $region37
    $region36: #{tpu_custom_call.1} parent=1 // pred_region
      %72 = dma.done [#allocation9], 12288
    $region37: #{tpu_custom_call.1} parent=1 // pred_fallthru
      _
    %v74 = vld [vmem:[#allocation5] sm:$0xf]
    %v75 = vld [vmem:[#allocation5 + $0x4] sm:$0xf]
    %v76 = vld [vmem:[#allocation5 + $0x8] sm:$0xf]
    %v77 = vld [vmem:[#allocation5 + $0xc] sm:$0xf]
    %v78 = vld [vmem:[#allocation5 + $0x10] sm:$0xf]
    %v79 = vld [vmem:[#allocation5 + $0x14] sm:$0xf]
    %v80 = vld [vmem:[#allocation5 + $0x18] sm:$0xf]
    %v81 = vld [vmem:[#allocation5 + $0x1c] sm:$0xf]
    %v82 = vld [vmem:[#allocation8] sm:$0xff]
    %v83 = vld [vmem:[#allocation8 + $0x8] sm:$0xff]
    %v84 = vld [vmem:[#allocation8 + $0x10] sm:$0xff]
    %v85 = vld [vmem:[#allocation8 + $0x18] sm:$0xff]
    %v86 = vld [vmem:[#allocation8 + $0x20] sm:$0xff]
    %v87 = vld [vmem:[#allocation8 + $0x28] sm:$0xff]
    %v88 = vld [vmem:[#allocation8 + $0x30] sm:$0xff]
    %v89 = vld [vmem:[#allocation8 + $0x38] sm:$0xff]
    %v90 = vld [vmem:[#allocation8 + $0x40] sm:$0xff]
    %v91 = vld [vmem:[#allocation8 + $0x48] sm:$0xff]
    %v92 = vld [vmem:[#allocation8 + $0x50] sm:$0xff]
    %v93 = vld [vmem:[#allocation8 + $0x58] sm:$0xff]
    %v94 = vld [vmem:[#allocation8 + $0x60] sm:$0xff]
    %v95 = vld [vmem:[#allocation8 + $0x68] sm:$0xff]
    %v96 = vld [vmem:[#allocation8 + $0x70] sm:$0xff]
    %v97 = vld [vmem:[#allocation8 + $0x78] sm:$0xff]
    %v98 = vld [vmem:[#allocation8 + $0x80] sm:$0xff]
    %v99 = vld [vmem:[#allocation8 + $0x88] sm:$0xff]
    %v100 = vld [vmem:[#allocation8 + $0x90] sm:$0xff]
    %v101 = vld [vmem:[#allocation8 + $0x98] sm:$0xff]
    %v102 = vld [vmem:[#allocation8 + $0xa0] sm:$0xff]
    %v103 = vld [vmem:[#allocation8 + $0xa8] sm:$0xff]
    %v104 = vld [vmem:[#allocation8 + $0xb0] sm:$0xff]
    %v105 = vld [vmem:[#allocation8 + $0xb8] sm:$0xff]
    %v106 = vld [vmem:[#allocation8 + $0xc0] sm:$0xff]
    %v107 = vld [vmem:[#allocation8 + $0xc8] sm:$0xff]
    %v108 = vld [vmem:[#allocation8 + $0xd0] sm:$0xff]
    %v109 = vld [vmem:[#allocation8 + $0xd8] sm:$0xff]
    %v110 = vld [vmem:[#allocation8 + $0xe0] sm:$0xff]
    %v111 = vld [vmem:[#allocation8 + $0xe8] sm:$0xff]
    %v112 = vld [vmem:[#allocation8 + $0xf0] sm:$0xff]
    %v113 = vld [vmem:[#allocation8 + $0xf8] sm:$0xff]
    %v114 = vld [vmem:[#allocation8 + $0x100] sm:$0xff]
    %v115 = vld [vmem:[#allocation8 + $0x108] sm:$0xff]
    %v116 = vld [vmem:[#allocation8 + $0x110] sm:$0xff]
    %v117 = vld [vmem:[#allocation8 + $0x118] sm:$0xff]
    %v118 = vld [vmem:[#allocation8 + $0x120] sm:$0xff]
    %v119 = vld [vmem:[#allocation8 + $0x128] sm:$0xff]
    %v120 = vld [vmem:[#allocation8 + $0x130] sm:$0xff]
    %v121 = vld [vmem:[#allocation8 + $0x138] sm:$0xff]
    %v122 = vld [vmem:[#allocation8 + $0x140] sm:$0xff]
    %v123 = vld [vmem:[#allocation8 + $0x148] sm:$0xff]
    %v124 = vld [vmem:[#allocation8 + $0x150] sm:$0xff]
    %v125 = vld [vmem:[#allocation8 + $0x158] sm:$0xff]
    %v126 = vld [vmem:[#allocation8 + $0x160] sm:$0xff]
    %v127 = vld [vmem:[#allocation8 + $0x168] sm:$0xff]
    %v128 = vld [vmem:[#allocation8 + $0x170] sm:$0xff]
    %v129 = vld [vmem:[#allocation8 + $0x178] sm:$0xff]
    %v130 = vld [vmem:[%s5] sm:$0x3f]
    %v132 = vperm.slane %v130, 0
    %v133 = vperm.slane %v130, 1
    %v134 = vperm.slane %v130, 2
    %v135 = vperm.slane %v130, 3
    %v136 = vperm.slane %v130, 4
    %v137 = vperm.slane %v130, 5
    %v152 = vunpack.c.l.b16 %v74
    %v153 = vunpack.c.l.b16 %v75
    %v154 = vunpack.c.l.b16 %v76
    %v155 = vunpack.c.l.b16 %v77
    %v156 = vunpack.c.l.b16 %v78
    %v157 = vunpack.c.l.b16 %v79
    %v158 = vunpack.c.l.b16 %v80
    %v159 = vunpack.c.l.b16 %v81
    %v160 = vpack.c.b16 %v153, %v152
    %v161 = vpack.c.b16 %v155, %v154
    %v162 = vpack.c.b16 %v157, %v156
    %v163 = vpack.c.b16 %v159, %v158
    %v216 = vunpack.c.l.b16 %v82
    %v217 = vunpack.c.h.b16 %v82
    %v218 = vunpack.c.l.b16 %v83
    %v219 = vunpack.c.h.b16 %v83
    %v220 = vunpack.c.l.b16 %v84
    %v221 = vunpack.c.h.b16 %v84
    %v222 = vunpack.c.l.b16 %v85
    %v223 = vunpack.c.h.b16 %v85
    %v224 = vunpack.c.l.b16 %v86
    %v225 = vunpack.c.h.b16 %v86
    %v226 = vunpack.c.l.b16 %v87
    %v227 = vunpack.c.h.b16 %v87
    %v228 = vunpack.c.l.b16 %v88
    %v229 = vunpack.c.h.b16 %v88
    %v230 = vunpack.c.l.b16 %v89
    %v231 = vunpack.c.h.b16 %v89
    %v232 = vunpack.c.l.b16 %v90
    %v233 = vunpack.c.h.b16 %v90
    %v234 = vunpack.c.l.b16 %v91
    %v235 = vunpack.c.h.b16 %v91
    %v236 = vunpack.c.l.b16 %v92
    %v237 = vunpack.c.h.b16 %v92
    %v238 = vunpack.c.l.b16 %v93
    %v239 = vunpack.c.h.b16 %v93
    %v240 = vunpack.c.l.b16 %v94
    %v241 = vunpack.c.h.b16 %v94
    %v242 = vunpack.c.l.b16 %v95
    %v243 = vunpack.c.h.b16 %v95
    %v244 = vunpack.c.l.b16 %v96
    %v245 = vunpack.c.h.b16 %v96
    %v246 = vunpack.c.l.b16 %v97
    %v247 = vunpack.c.h.b16 %v97
    %v248 = vunpack.c.l.b16 %v98
    %v249 = vunpack.c.h.b16 %v98
    %v250 = vunpack.c.l.b16 %v99
    %v251 = vunpack.c.h.b16 %v99
    %v252 = vunpack.c.l.b16 %v100
    %v253 = vunpack.c.h.b16 %v100
    %v254 = vunpack.c.l.b16 %v101
    %v255 = vunpack.c.h.b16 %v101
    %v256 = vunpack.c.l.b16 %v102
    %v257 = vunpack.c.h.b16 %v102
    %v258 = vunpack.c.l.b16 %v103
    %v259 = vunpack.c.h.b16 %v103
    %v260 = vunpack.c.l.b16 %v104
    %v261 = vunpack.c.h.b16 %v104
    %v262 = vunpack.c.l.b16 %v105
    %v263 = vunpack.c.h.b16 %v105
    %v264 = vunpack.c.l.b16 %v106
    %v265 = vunpack.c.h.b16 %v106
    %v266 = vunpack.c.l.b16 %v107
    %v267 = vunpack.c.h.b16 %v107
    %v268 = vunpack.c.l.b16 %v108
    %v269 = vunpack.c.h.b16 %v108
    %v270 = vunpack.c.l.b16 %v109
    %v271 = vunpack.c.h.b16 %v109
    %v272 = vunpack.c.l.b16 %v110
    %v273 = vunpack.c.h.b16 %v110
    %v274 = vunpack.c.l.b16 %v111
    %v275 = vunpack.c.h.b16 %v111
    %v276 = vunpack.c.l.b16 %v112
    %v277 = vunpack.c.h.b16 %v112
    %v278 = vunpack.c.l.b16 %v113
    %v279 = vunpack.c.h.b16 %v113
    %v280 = vunpack.c.l.b16 %v114
    %v281 = vunpack.c.h.b16 %v114
    %v282 = vunpack.c.l.b16 %v115
    %v283 = vunpack.c.h.b16 %v115
    %v284 = vunpack.c.l.b16 %v116
    %v285 = vunpack.c.h.b16 %v116
    %v286 = vunpack.c.l.b16 %v117
    %v287 = vunpack.c.h.b16 %v117
    %v288 = vunpack.c.l.b16 %v118
    %v289 = vunpack.c.h.b16 %v118
    %v290 = vunpack.c.l.b16 %v119
    %v291 = vunpack.c.h.b16 %v119
    %v292 = vunpack.c.l.b16 %v120
    %v293 = vunpack.c.h.b16 %v120
    %v294 = vunpack.c.l.b16 %v121
    %v295 = vunpack.c.h.b16 %v121
    %v296 = vunpack.c.l.b16 %v122
    %v297 = vunpack.c.h.b16 %v122
    %v298 = vunpack.c.l.b16 %v123
    %v299 = vunpack.c.h.b16 %v123
    %v300 = vunpack.c.l.b16 %v124
    %v301 = vunpack.c.h.b16 %v124
    %v302 = vunpack.c.l.b16 %v125
    %v303 = vunpack.c.h.b16 %v125
    %v304 = vunpack.c.l.b16 %v126
    %v305 = vunpack.c.h.b16 %v126
    %v306 = vunpack.c.l.b16 %v127
    %v307 = vunpack.c.h.b16 %v127
    %v308 = vunpack.c.l.b16 %v128
    %v309 = vunpack.c.h.b16 %v128
    %v310 = vunpack.c.l.b16 %v129
    %v311 = vunpack.c.h.b16 %v129
    %v312 = vpack.c.b16 %v222, %v216
    %v313 = vpack.c.b16 %v223, %v217
    %v314 = vpack.c.b16 %v224, %v218
    %v315 = vpack.c.b16 %v225, %v219
    %v316 = vpack.c.b16 %v226, %v220
    %v317 = vpack.c.b16 %v227, %v221
    %v318 = vpack.c.b16 %v234, %v228
    %v319 = vpack.c.b16 %v235, %v229
    %v320 = vpack.c.b16 %v236, %v230
    %v321 = vpack.c.b16 %v237, %v231
    %v322 = vpack.c.b16 %v238, %v232
    %v323 = vpack.c.b16 %v239, %v233
    %v324 = vpack.c.b16 %v246, %v240
    %v325 = vpack.c.b16 %v247, %v241
    %v326 = vpack.c.b16 %v248, %v242
    %v327 = vpack.c.b16 %v249, %v243
    %v328 = vpack.c.b16 %v250, %v244
    %v329 = vpack.c.b16 %v251, %v245
    %v330 = vpack.c.b16 %v258, %v252
    %v331 = vpack.c.b16 %v259, %v253
    %v332 = vpack.c.b16 %v260, %v254
    %v333 = vpack.c.b16 %v261, %v255
    %v334 = vpack.c.b16 %v262, %v256
    %v335 = vpack.c.b16 %v263, %v257
    %v336 = vpack.c.b16 %v270, %v264
    %v337 = vpack.c.b16 %v271, %v265
    %v338 = vpack.c.b16 %v272, %v266
    %v339 = vpack.c.b16 %v273, %v267
    %v340 = vpack.c.b16 %v274, %v268
    %v341 = vpack.c.b16 %v275, %v269
    %v342 = vpack.c.b16 %v282, %v276
    %v343 = vpack.c.b16 %v283, %v277
    %v344 = vpack.c.b16 %v284, %v278
    %v345 = vpack.c.b16 %v285, %v279
    %v346 = vpack.c.b16 %v286, %v280
    %v347 = vpack.c.b16 %v287, %v281
    %v348 = vpack.c.b16 %v294, %v288
    %v349 = vpack.c.b16 %v295, %v289
    %v350 = vpack.c.b16 %v296, %v290
    %v351 = vpack.c.b16 %v297, %v291
    %v352 = vpack.c.b16 %v298, %v292
    %v353 = vpack.c.b16 %v299, %v293
    %v354 = vpack.c.b16 %v306, %v300
    %v355 = vpack.c.b16 %v307, %v301
    %v356 = vpack.c.b16 %v308, %v302
    %v357 = vpack.c.b16 %v309, %v303
    %v358 = vpack.c.b16 %v310, %v304
    %v359 = vpack.c.b16 %v311, %v305
    %408 = vmatpush.bf16.msra.mxu0 %v354
    %409 = vmatpush.bf16.msra.mxu0 %v348
    %410 = vmatpush.bf16.msra.mxu0 %v342
    %411 = vmatpush.bf16.msra.mxu0 %v336
    %412 = vmatpush.bf16.msra.mxu0 %v330
    %413 = vmatpush.bf16.msra.mxu0 %v324
    %414 = vmatpush.bf16.msra.mxu0 %v318
    %415 = vmatpush.bf16.msra.mxu0 %v312
    %416 = vmatmul.bf16.gmra.mxu0 %v160
    %v417 = vpop.f32.mrf.mxu0
    %v418 = vadd.f32 %v132, %v417
    %v419 = vpop.f32.mrf.mxu0
    %v420 = vadd.f32 %v132, %v419
    %421 = vmatmul.bf16.gmra.mxu0 %v161
    %v422 = vpop.f32.mrf.mxu0
    %v423 = vadd.f32 %v132, %v422
    %v424 = vpop.f32.mrf.mxu0
    %v425 = vadd.f32 %v132, %v424
    %426 = vmatmul.bf16.gmra.mxu0 %v162
    %v427 = vpop.f32.mrf.mxu0
    %v428 = vadd.f32 %v132, %v427
    %v429 = vpop.f32.mrf.mxu0
    %v430 = vadd.f32 %v132, %v429
    %431 = vmatmul.bf16.gmra.mxu0 %v163
    %v432 = vpop.f32.mrf.mxu0
    %v433 = vadd.f32 %v132, %v432
    %v434 = vpop.f32.mrf.mxu0
    %v435 = vadd.f32 %v132, %v434
    %436 = vdwg.mxu0
    %437 = vmatpush.bf16.msra.mxu0 %v355
    %438 = vmatpush.bf16.msra.mxu0 %v349
    %439 = vmatpush.bf16.msra.mxu0 %v343
    %440 = vmatpush.bf16.msra.mxu0 %v337
    %441 = vmatpush.bf16.msra.mxu0 %v331
    %442 = vmatpush.bf16.msra.mxu0 %v325
    %443 = vmatpush.bf16.msra.mxu0 %v319
    %444 = vmatpush.bf16.msra.mxu0 %v313
    %445 = vmatmul.bf16.gmra.mxu0 %v160
    %v446 = vpop.f32.mrf.mxu0
    %v447 = vadd.f32 %v133, %v446
    %v448 = vpop.f32.mrf.mxu0
    %v449 = vadd.f32 %v133, %v448
    %450 = vmatmul.bf16.gmra.mxu0 %v161
    %v451 = vpop.f32.mrf.mxu0
    %v452 = vadd.f32 %v133, %v451
    %v453 = vpop.f32.mrf.mxu0
    %v454 = vadd.f32 %v133, %v453
    %455 = vmatmul.bf16.gmra.mxu0 %v162
    %v456 = vpop.f32.mrf.mxu0
    %v457 = vadd.f32 %v133, %v456
    %v458 = vpop.f32.mrf.mxu0
    %v459 = vadd.f32 %v133, %v458
    %460 = vmatmul.bf16.gmra.mxu0 %v163
    %v461 = vpop.f32.mrf.mxu0
    %v462 = vadd.f32 %v133, %v461
    %v463 = vpop.f32.mrf.mxu0
    %v464 = vadd.f32 %v133, %v463
    %465 = vdwg.mxu0
    %466 = vmatpush.bf16.msra.mxu0 %v356
    %467 = vmatpush.bf16.msra.mxu0 %v350
    %468 = vmatpush.bf16.msra.mxu0 %v344
    %469 = vmatpush.bf16.msra.mxu0 %v338
    %470 = vmatpush.bf16.msra.mxu0 %v332
    %471 = vmatpush.bf16.msra.mxu0 %v326
    %472 = vmatpush.bf16.msra.mxu0 %v320
    %473 = vmatpush.bf16.msra.mxu0 %v314
    %474 = vmatmul.bf16.gmra.mxu0 %v160
    %v475 = vpop.f32.mrf.mxu0
    %v476 = vadd.f32 %v134, %v475
    %v477 = vpop.f32.mrf.mxu0
    %v478 = vadd.f32 %v134, %v477
    %479 = vmatmul.bf16.gmra.mxu0 %v161
    %v480 = vpop.f32.mrf.mxu0
    %v481 = vadd.f32 %v134, %v480
    %v482 = vpop.f32.mrf.mxu0
    %v483 = vadd.f32 %v134, %v482
    %484 = vmatmul.bf16.gmra.mxu0 %v162
    %v485 = vpop.f32.mrf.mxu0
    %v486 = vadd.f32 %v134, %v485
    %v487 = vpop.f32.mrf.mxu0
    %v488 = vadd.f32 %v134, %v487
    %489 = vmatmul.bf16.gmra.mxu0 %v163
    %v490 = vpop.f32.mrf.mxu0
    %v491 = vadd.f32 %v134, %v490
    %v492 = vpop.f32.mrf.mxu0
    %v493 = vadd.f32 %v134, %v492
    %494 = vdwg.mxu0
    %495 = vmatpush.bf16.msra.mxu0 %v357
    %496 = vmatpush.bf16.msra.mxu0 %v351
    %497 = vmatpush.bf16.msra.mxu0 %v345
    %498 = vmatpush.bf16.msra.mxu0 %v339
    %499 = vmatpush.bf16.msra.mxu0 %v333
    %500 = vmatpush.bf16.msra.mxu0 %v327
    %501 = vmatpush.bf16.msra.mxu0 %v321
    %502 = vmatpush.bf16.msra.mxu0 %v315
    %503 = vmatmul.bf16.gmra.mxu0 %v160
    %v504 = vpop.f32.mrf.mxu0
    %v505 = vadd.f32 %v135, %v504
    %v506 = vpop.f32.mrf.mxu0
    %v507 = vadd.f32 %v135, %v506
    %508 = vmatmul.bf16.gmra.mxu0 %v161
    %v509 = vpop.f32.mrf.mxu0
    %v510 = vadd.f32 %v135, %v509
    %v511 = vpop.f32.mrf.mxu0
    %v512 = vadd.f32 %v135, %v511
    %513 = vmatmul.bf16.gmra.mxu0 %v162
    %v514 = vpop.f32.mrf.mxu0
    %v515 = vadd.f32 %v135, %v514
    %v516 = vpop.f32.mrf.mxu0
    %v517 = vadd.f32 %v135, %v516
    %518 = vmatmul.bf16.gmra.mxu0 %v163
    %v519 = vpop.f32.mrf.mxu0
    %v520 = vadd.f32 %v135, %v519
    %v521 = vpop.f32.mrf.mxu0
    %v522 = vadd.f32 %v135, %v521
    %523 = vdwg.mxu0
    %524 = vmatpush.bf16.msra.mxu0 %v358
    %525 = vmatpush.bf16.msra.mxu0 %v352
    %526 = vmatpush.bf16.msra.mxu0 %v346
    %527 = vmatpush.bf16.msra.mxu0 %v340
    %528 = vmatpush.bf16.msra.mxu0 %v334
    %529 = vmatpush.bf16.msra.mxu0 %v328
    %530 = vmatpush.bf16.msra.mxu0 %v322
    %531 = vmatpush.bf16.msra.mxu0 %v316
    %532 = vmatmul.bf16.gmra.mxu0 %v160
    %v533 = vpop.f32.mrf.mxu0
    %v534 = vadd.f32 %v136, %v533
    %v535 = vpop.f32.mrf.mxu0
    %v536 = vadd.f32 %v136, %v535
    %537 = vmatmul.bf16.gmra.mxu0 %v161
    %v538 = vpop.f32.mrf.mxu0
    %v539 = vadd.f32 %v136, %v538
    %v540 = vpop.f32.mrf.mxu0
    %v541 = vadd.f32 %v136, %v540
    %542 = vmatmul.bf16.gmra.mxu0 %v162
    %v543 = vpop.f32.mrf.mxu0
    %v544 = vadd.f32 %v136, %v543
    %v545 = vpop.f32.mrf.mxu0
    %v546 = vadd.f32 %v136, %v545
    %547 = vmatmul.bf16.gmra.mxu0 %v163
    %v548 = vpop.f32.mrf.mxu0
    %v549 = vadd.f32 %v136, %v548
    %v550 = vpop.f32.mrf.mxu0
    %v551 = vadd.f32 %v136, %v550
    %552 = vdwg.mxu0
    %553 = vmatpush.bf16.msra.mxu0 %v359
    %554 = vmatpush.bf16.msra.mxu0 %v353
    %555 = vmatpush.bf16.msra.mxu0 %v347
    %556 = vmatpush.bf16.msra.mxu0 %v341
    %557 = vmatpush.bf16.msra.mxu0 %v335
    %558 = vmatpush.bf16.msra.mxu0 %v329
    %559 = vmatpush.bf16.msra.mxu0 %v323
    %560 = vmatpush.bf16.msra.mxu0 %v317
    %561 = vmatmul.bf16.gmra.mxu0 %v160
    %v562 = vpop.f32.mrf.mxu0
    %v563 = vadd.f32 %v137, %v562
    %v564 = vpop.f32.mrf.mxu0
    %v565 = vadd.f32 %v137, %v564
    %566 = vmatmul.bf16.gmra.mxu0 %v161
    %v567 = vpop.f32.mrf.mxu0
    %v568 = vadd.f32 %v137, %v567
    %v569 = vpop.f32.mrf.mxu0
    %v570 = vadd.f32 %v137, %v569
    %571 = vmatmul.bf16.gmra.mxu0 %v162
    %v572 = vpop.f32.mrf.mxu0
    %v573 = vadd.f32 %v137, %v572
    %v574 = vpop.f32.mrf.mxu0
    %v575 = vadd.f32 %v137, %v574
    %576 = vmatmul.bf16.gmra.mxu0 %v163
    %v577 = vpop.f32.mrf.mxu0
    %v578 = vadd.f32 %v137, %v577
    %v579 = vpop.f32.mrf.mxu0
    %v580 = vadd.f32 %v137, %v579
    %581 = vdwg.mxu0
    %582 = vst [vmem:[#allocation2] sm:$0xff] %v418
    %583 = vst [vmem:[#allocation2 + $0x8] sm:$0xff] %v447
    %584 = vst [vmem:[#allocation2 + $0x10] sm:$0xff] %v476
    %585 = vst [vmem:[#allocation2 + $0x18] sm:$0xff] %v505
    %586 = vst [vmem:[#allocation2 + $0x20] sm:$0xff] %v534
    %587 = vst [vmem:[#allocation2 + $0x28] sm:$0xff] %v563
    %588 = vst [vmem:[#allocation2 + $0x30] sm:$0xff] %v420
    %589 = vst [vmem:[#allocation2 + $0x38] sm:$0xff] %v449
    %590 = vst [vmem:[#allocation2 + $0x40] sm:$0xff] %v478
    %591 = vst [vmem:[#allocation2 + $0x48] sm:$0xff] %v507
    %592 = vst [vmem:[#allocation2 + $0x50] sm:$0xff] %v536
    %593 = vst [vmem:[#allocation2 + $0x58] sm:$0xff] %v565
    %594 = vst [vmem:[#allocation2 + $0x60] sm:$0xff] %v423
    %595 = vst [vmem:[#allocation2 + $0x68] sm:$0xff] %v452
    %596 = vst [vmem:[#allocation2 + $0x70] sm:$0xff] %v481
    %597 = vst [vmem:[#allocation2 + $0x78] sm:$0xff] %v510
    %598 = vst [vmem:[#allocation2 + $0x80] sm:$0xff] %v539
    %599 = vst [vmem:[#allocation2 + $0x88] sm:$0xff] %v568
    %600 = vst [vmem:[#allocation2 + $0x90] sm:$0xff] %v425
    %601 = vst [vmem:[#allocation2 + $0x98] sm:$0xff] %v454
    %602 = vst [vmem:[#allocation2 + $0xa0] sm:$0xff] %v483
    %603 = vst [vmem:[#allocation2 + $0xa8] sm:$0xff] %v512
    %604 = vst [vmem:[#allocation2 + $0xb0] sm:$0xff] %v541
    %605 = vst [vmem:[#allocation2 + $0xb8] sm:$0xff] %v570
    %606 = vst [vmem:[#allocation2 + $0xc0] sm:$0xff] %v428
    %607 = vst [vmem:[#allocation2 + $0xc8] sm:$0xff] %v457
    %608 = vst [vmem:[#allocation2 + $0xd0] sm:$0xff] %v486
    %609 = vst [vmem:[#allocation2 + $0xd8] sm:$0xff] %v515
    %610 = vst [vmem:[#allocation2 + $0xe0] sm:$0xff] %v544
    %611 = vst [vmem:[#allocation2 + $0xe8] sm:$0xff] %v573
    %612 = vst [vmem:[#allocation2 + $0xf0] sm:$0xff] %v430
    %613 = vst [vmem:[#allocation2 + $0xf8] sm:$0xff] %v459
    %614 = vst [vmem:[#allocation2 + $0x100] sm:$0xff] %v488
    %615 = vst [vmem:[#allocation2 + $0x108] sm:$0xff] %v517
    %616 = vst [vmem:[#allocation2 + $0x110] sm:$0xff] %v546
    %617 = vst [vmem:[#allocation2 + $0x118] sm:$0xff] %v575
    %618 = vst [vmem:[#allocation2 + $0x120] sm:$0xff] %v433
    %619 = vst [vmem:[#allocation2 + $0x128] sm:$0xff] %v462
    %620 = vst [vmem:[#allocation2 + $0x130] sm:$0xff] %v491
    %621 = vst [vmem:[#allocation2 + $0x138] sm:$0xff] %v520
    %622 = vst [vmem:[#allocation2 + $0x140] sm:$0xff] %v549
    %623 = vst [vmem:[#allocation2 + $0x148] sm:$0xff] %v578
    %624 = vst [vmem:[#allocation2 + $0x150] sm:$0xff] %v435
    %625 = vst [vmem:[#allocation2 + $0x158] sm:$0xff] %v464
    %626 = vst [vmem:[#allocation2 + $0x160] sm:$0xff] %v493
    %627 = vst [vmem:[#allocation2 + $0x168] sm:$0xff] %v522
    %628 = vst [vmem:[#allocation2 + $0x170] sm:$0xff] %v551
    %629 = vst [vmem:[#allocation2 + $0x178] sm:$0xff] %v580
    %v630 = vld [vmem:[%s1] sm:$0xff]
    %v631 = vld [vmem:[%s6] sm:$0x3]
    %v633 = vperm.slane %v631, 0
    %v634 = vperm.slane %v631, 1
    %s637 = sld [smem:[#allocation4]]
    // While loop
    $region38: #{tpu_custom_call.1} parent=1 // loop_pre_header
      _
    $region39: #{tpu_custom_call.1} parent=1 // loop_header
      %s639 = sphi 0, %s641
      %p640 = scmp.ge.s32.totalorder %s639, %s637
      %v644 = vphi 0.0, %v1501
      %v645 = vphi 0.0, %v1502
      %v646 = vphi 0, %v1503
    $region40: #{tpu_custom_call.1} parent=1 // loop_header_branch
      %643 = sbr.rel (%p640) target = $region44
    $region41: #{tpu_custom_call.1} parent=1 // loop_body
      %v647 = vld [vmem:[#allocation10] sm:$0xff]
      %v648 = vld [vmem:[#allocation10 + $0x8] sm:$0xff]
      %v649 = vld [vmem:[#allocation10 + $0x10] sm:$0xff]
      %v650 = vld [vmem:[#allocation10 + $0x18] sm:$0xff]
      %v651 = vld [vmem:[#allocation10 + $0x20] sm:$0xff]
      %v652 = vld [vmem:[#allocation10 + $0x28] sm:$0xff]
      %v653 = vld [vmem:[#allocation10 + $0x30] sm:$0xff]
      %v654 = vld [vmem:[#allocation10 + $0x38] sm:$0xff]
      %v655 = vld [vmem:[#allocation10 + $0x40] sm:$0xff]
      %v656 = vld [vmem:[#allocation10 + $0x48] sm:$0xff]
      %v657 = vld [vmem:[#allocation10 + $0x50] sm:$0xff]
      %v658 = vld [vmem:[#allocation10 + $0x58] sm:$0xff]
      %v659 = vld [vmem:[#allocation10 + $0x60] sm:$0xff]
      %v660 = vld [vmem:[#allocation10 + $0x68] sm:$0xff]
      %v661 = vld [vmem:[#allocation10 + $0x70] sm:$0xff]
      %v662 = vld [vmem:[#allocation10 + $0x78] sm:$0xff]
      %v663 = vld [vmem:[#allocation10 + $0x80] sm:$0xff]
      %v664 = vld [vmem:[#allocation10 + $0x88] sm:$0xff]
      %v665 = vld [vmem:[#allocation10 + $0x90] sm:$0xff]
      %v666 = vld [vmem:[#allocation10 + $0x98] sm:$0xff]
      %v667 = vld [vmem:[#allocation10 + $0xa0] sm:$0xff]
      %v668 = vld [vmem:[#allocation10 + $0xa8] sm:$0xff]
      %v669 = vld [vmem:[#allocation10 + $0xb0] sm:$0xff]
      %v670 = vld [vmem:[#allocation10 + $0xb8] sm:$0xff]
      %v671 = vld [vmem:[#allocation10 + $0xc0] sm:$0xff]
      %v672 = vld [vmem:[#allocation10 + $0xc8] sm:$0xff]
      %v673 = vld [vmem:[#allocation10 + $0xd0] sm:$0xff]
      %v674 = vld [vmem:[#allocation10 + $0xd8] sm:$0xff]
      %v675 = vld [vmem:[#allocation10 + $0xe0] sm:$0xff]
      %v676 = vld [vmem:[#allocation10 + $0xe8] sm:$0xff]
      %v677 = vld [vmem:[#allocation10 + $0xf0] sm:$0xff]
      %v678 = vld [vmem:[#allocation10 + $0xf8] sm:$0xff]
      %v679 = vld [vmem:[#allocation10 + $0x100] sm:$0xff]
      %v680 = vld [vmem:[#allocation10 + $0x108] sm:$0xff]
      %v681 = vld [vmem:[#allocation10 + $0x110] sm:$0xff]
      %v682 = vld [vmem:[#allocation10 + $0x118] sm:$0xff]
      %v683 = vld [vmem:[#allocation10 + $0x120] sm:$0xff]
      %v684 = vld [vmem:[#allocation10 + $0x128] sm:$0xff]
      %v685 = vld [vmem:[#allocation10 + $0x130] sm:$0xff]
      %v686 = vld [vmem:[#allocation10 + $0x138] sm:$0xff]
      %v687 = vld [vmem:[#allocation10 + $0x140] sm:$0xff]
      %v688 = vld [vmem:[#allocation10 + $0x148] sm:$0xff]
      %v689 = vld [vmem:[#allocation10 + $0x150] sm:$0xff]
      %v690 = vld [vmem:[#allocation10 + $0x158] sm:$0xff]
      %v691 = vld [vmem:[#allocation10 + $0x160] sm:$0xff]
      %v692 = vld [vmem:[#allocation10 + $0x168] sm:$0xff]
      %v693 = vld [vmem:[#allocation10 + $0x170] sm:$0xff]
      %v694 = vld [vmem:[#allocation10 + $0x178] sm:$0xff]
      %v695 = vld [vmem:[#allocation10 + $0x180] sm:$0xff]
      %v696 = vld [vmem:[#allocation10 + $0x188] sm:$0xff]
      %v697 = vld [vmem:[#allocation10 + $0x190] sm:$0xff]
      %v698 = vld [vmem:[#allocation10 + $0x198] sm:$0xff]
      %v699 = vld [vmem:[#allocation10 + $0x1a0] sm:$0xff]
      %v700 = vld [vmem:[#allocation10 + $0x1a8] sm:$0xff]
      %v701 = vld [vmem:[#allocation10 + $0x1b0] sm:$0xff]
      %v702 = vld [vmem:[#allocation10 + $0x1b8] sm:$0xff]
      %v703 = vld [vmem:[#allocation10 + $0x1c0] sm:$0xff]
      %v704 = vld [vmem:[#allocation10 + $0x1c8] sm:$0xff]
      %v705 = vld [vmem:[#allocation10 + $0x1d0] sm:$0xff]
      %v706 = vld [vmem:[#allocation10 + $0x1d8] sm:$0xff]
      %v707 = vld [vmem:[#allocation10 + $0x1e0] sm:$0xff]
      %v708 = vld [vmem:[#allocation10 + $0x1e8] sm:$0xff]
      %v709 = vld [vmem:[#allocation10 + $0x1f0] sm:$0xff]
      %v710 = vld [vmem:[#allocation10 + $0x1f8] sm:$0xff]
      %v711 = vld [vmem:[#allocation10 + $0x200] sm:$0xff]
      %v712 = vld [vmem:[#allocation10 + $0x208] sm:$0xff]
      %v713 = vld [vmem:[#allocation10 + $0x210] sm:$0xff]
      %v714 = vld [vmem:[#allocation10 + $0x218] sm:$0xff]
      %v715 = vld [vmem:[#allocation10 + $0x220] sm:$0xff]
      %v716 = vld [vmem:[#allocation10 + $0x228] sm:$0xff]
      %v717 = vld [vmem:[#allocation10 + $0x230] sm:$0xff]
      %v718 = vld [vmem:[#allocation10 + $0x238] sm:$0xff]
      %v719 = vld [vmem:[#allocation10 + $0x240] sm:$0xff]
      %v720 = vld [vmem:[#allocation10 + $0x248] sm:$0xff]
      %v721 = vld [vmem:[#allocation10 + $0x250] sm:$0xff]
      %v722 = vld [vmem:[#allocation10 + $0x258] sm:$0xff]
      %v723 = vld [vmem:[#allocation10 + $0x260] sm:$0xff]
      %v724 = vld [vmem:[#allocation10 + $0x268] sm:$0xff]
      %v725 = vld [vmem:[#allocation10 + $0x270] sm:$0xff]
      %v726 = vld [vmem:[#allocation10 + $0x278] sm:$0xff]
      %v727 = vld [vmem:[#allocation10 + $0x280] sm:$0xff]
      %v728 = vld [vmem:[#allocation10 + $0x288] sm:$0xff]
      %v729 = vld [vmem:[#allocation10 + $0x290] sm:$0xff]
      %v730 = vld [vmem:[#allocation10 + $0x298] sm:$0xff]
      %v731 = vld [vmem:[#allocation10 + $0x2a0] sm:$0xff]
      %v732 = vld [vmem:[#allocation10 + $0x2a8] sm:$0xff]
      %v733 = vld [vmem:[#allocation10 + $0x2b0] sm:$0xff]
      %v734 = vld [vmem:[#allocation10 + $0x2b8] sm:$0xff]
      %v735 = vld [vmem:[#allocation10 + $0x2c0] sm:$0xff]
      %v736 = vld [vmem:[#allocation10 + $0x2c8] sm:$0xff]
      %v737 = vld [vmem:[#allocation10 + $0x2d0] sm:$0xff]
      %v738 = vld [vmem:[#allocation10 + $0x2d8] sm:$0xff]
      %v739 = vld [vmem:[#allocation10 + $0x2e0] sm:$0xff]
      %v740 = vld [vmem:[#allocation10 + $0x2e8] sm:$0xff]
      %v741 = vld [vmem:[#allocation10 + $0x2f0] sm:$0xff]
      %v742 = vld [vmem:[#allocation10 + $0x2f8] sm:$0xff]
      %v744 = vunpack.c.l.b16 %v646
      %v745 = vunpack.c.h.b16 %v646
      %v746 = vpack.c.b16 %v744, %v744
      %v747 = vpack.c.b16 %v745, %v745
      %v846 = vunpack.c.l.b16 %v647
      %v847 = vunpack.c.h.b16 %v647
      %v848 = vunpack.c.l.b16 %v648
      %v849 = vunpack.c.h.b16 %v648
      %v850 = vunpack.c.l.b16 %v649
      %v851 = vunpack.c.h.b16 %v649
      %v852 = vunpack.c.l.b16 %v650
      %v853 = vunpack.c.h.b16 %v650
      %v854 = vunpack.c.l.b16 %v651
      %v855 = vunpack.c.h.b16 %v651
      %v856 = vunpack.c.l.b16 %v652
      %v857 = vunpack.c.h.b16 %v652
      %v858 = vunpack.c.l.b16 %v653
      %v859 = vunpack.c.h.b16 %v653
      %v860 = vunpack.c.l.b16 %v654
      %v861 = vunpack.c.h.b16 %v654
      %v862 = vunpack.c.l.b16 %v655
      %v863 = vunpack.c.h.b16 %v655
      %v864 = vunpack.c.l.b16 %v656
      %v865 = vunpack.c.h.b16 %v656
      %v866 = vunpack.c.l.b16 %v657
      %v867 = vunpack.c.h.b16 %v657
      %v868 = vunpack.c.l.b16 %v658
      %v869 = vunpack.c.h.b16 %v658
      %v870 = vunpack.c.l.b16 %v659
      %v871 = vunpack.c.h.b16 %v659
      %v872 = vunpack.c.l.b16 %v660
      %v873 = vunpack.c.h.b16 %v660
      %v874 = vunpack.c.l.b16 %v661
      %v875 = vunpack.c.h.b16 %v661
      %v876 = vunpack.c.l.b16 %v662
      %v877 = vunpack.c.h.b16 %v662
      %v878 = vunpack.c.l.b16 %v663
      %v879 = vunpack.c.h.b16 %v663
      %v880 = vunpack.c.l.b16 %v664
      %v881 = vunpack.c.h.b16 %v664
      %v882 = vunpack.c.l.b16 %v665
      %v883 = vunpack.c.h.b16 %v665
      %v884 = vunpack.c.l.b16 %v666
      %v885 = vunpack.c.h.b16 %v666
      %v886 = vunpack.c.l.b16 %v667
      %v887 = vunpack.c.h.b16 %v667
      %v888 = vunpack.c.l.b16 %v668
      %v889 = vunpack.c.h.b16 %v668
      %v890 = vunpack.c.l.b16 %v669
      %v891 = vunpack.c.h.b16 %v669
      %v892 = vunpack.c.l.b16 %v670
      %v893 = vunpack.c.h.b16 %v670
      %v894 = vunpack.c.l.b16 %v671
      %v895 = vunpack.c.h.b16 %v671
      %v896 = vunpack.c.l.b16 %v672
      %v897 = vunpack.c.h.b16 %v672
      %v898 = vunpack.c.l.b16 %v673
      %v899 = vunpack.c.h.b16 %v673
      %v900 = vunpack.c.l.b16 %v674
      %v901 = vunpack.c.h.b16 %v674
      %v902 = vunpack.c.l.b16 %v675
      %v903 = vunpack.c.h.b16 %v675
      %v904 = vunpack.c.l.b16 %v676
      %v905 = vunpack.c.h.b16 %v676
      %v906 = vunpack.c.l.b16 %v677
      %v907 = vunpack.c.h.b16 %v677
      %v908 = vunpack.c.l.b16 %v678
      %v909 = vunpack.c.h.b16 %v678
      %v910 = vunpack.c.l.b16 %v679
      %v911 = vunpack.c.h.b16 %v679
      %v912 = vunpack.c.l.b16 %v680
      %v913 = vunpack.c.h.b16 %v680
      %v914 = vunpack.c.l.b16 %v681
      %v915 = vunpack.c.h.b16 %v681
      %v916 = vunpack.c.l.b16 %v682
      %v917 = vunpack.c.h.b16 %v682
      %v918 = vunpack.c.l.b16 %v683
      %v919 = vunpack.c.h.b16 %v683
      %v920 = vunpack.c.l.b16 %v684
      %v921 = vunpack.c.h.b16 %v684
      %v922 = vunpack.c.l.b16 %v685
      %v923 = vunpack.c.h.b16 %v685
      %v924 = vunpack.c.l.b16 %v686
      %v925 = vunpack.c.h.b16 %v686
      %v926 = vunpack.c.l.b16 %v687
      %v927 = vunpack.c.h.b16 %v687
      %v928 = vunpack.c.l.b16 %v688
      %v929 = vunpack.c.h.b16 %v688
      %v930 = vunpack.c.l.b16 %v689
      %v931 = vunpack.c.h.b16 %v689
      %v932 = vunpack.c.l.b16 %v690
      %v933 = vunpack.c.h.b16 %v690
      %v934 = vunpack.c.l.b16 %v691
      %v935 = vunpack.c.h.b16 %v691
      %v936 = vunpack.c.l.b16 %v692
      %v937 = vunpack.c.h.b16 %v692
      %v938 = vunpack.c.l.b16 %v693
      %v939 = vunpack.c.h.b16 %v693
      %v940 = vunpack.c.l.b16 %v694
      %v941 = vunpack.c.h.b16 %v694
      %v942 = vunpack.c.l.b16 %v695
      %v943 = vunpack.c.h.b16 %v695
      %v944 = vunpack.c.l.b16 %v696
      %v945 = vunpack.c.h.b16 %v696
      %v946 = vunpack.c.l.b16 %v697
      %v947 = vunpack.c.h.b16 %v697
      %v948 = vunpack.c.l.b16 %v698
      %v949 = vunpack.c.h.b16 %v698
      %v950 = vunpack.c.l.b16 %v699
      %v951 = vunpack.c.h.b16 %v699
      %v952 = vunpack.c.l.b16 %v700
      %v953 = vunpack.c.h.b16 %v700
      %v954 = vunpack.c.l.b16 %v701
      %v955 = vunpack.c.h.b16 %v701
      %v956 = vunpack.c.l.b16 %v702
      %v957 = vunpack.c.h.b16 %v702
      %v958 = vunpack.c.l.b16 %v703
      %v959 = vunpack.c.h.b16 %v703
      %v960 = vunpack.c.l.b16 %v704
      %v961 = vunpack.c.h.b16 %v704
      %v962 = vunpack.c.l.b16 %v705
      %v963 = vunpack.c.h.b16 %v705
      %v964 = vunpack.c.l.b16 %v706
      %v965 = vunpack.c.h.b16 %v706
      %v966 = vunpack.c.l.b16 %v707
      %v967 = vunpack.c.h.b16 %v707
      %v968 = vunpack.c.l.b16 %v708
      %v969 = vunpack.c.h.b16 %v708
      %v970 = vunpack.c.l.b16 %v709
      %v971 = vunpack.c.h.b16 %v709
      %v972 = vunpack.c.l.b16 %v710
      %v973 = vunpack.c.h.b16 %v710
      %v974 = vunpack.c.l.b16 %v711
      %v975 = vunpack.c.h.b16 %v711
      %v976 = vunpack.c.l.b16 %v712
      %v977 = vunpack.c.h.b16 %v712
      %v978 = vunpack.c.l.b16 %v713
      %v979 = vunpack.c.h.b16 %v713
      %v980 = vunpack.c.l.b16 %v714
      %v981 = vunpack.c.h.b16 %v714
      %v982 = vunpack.c.l.b16 %v715
      %v983 = vunpack.c.h.b16 %v715
      %v984 = vunpack.c.l.b16 %v716
      %v985 = vunpack.c.h.b16 %v716
      %v986 = vunpack.c.l.b16 %v717
      %v987 = vunpack.c.h.b16 %v717
      %v988 = vunpack.c.l.b16 %v718
      %v989 = vunpack.c.h.b16 %v718
      %v990 = vunpack.c.l.b16 %v719
      %v991 = vunpack.c.h.b16 %v719
      %v992 = vunpack.c.l.b16 %v720
      %v993 = vunpack.c.h.b16 %v720
      %v994 = vunpack.c.l.b16 %v721
      %v995 = vunpack.c.h.b16 %v721
      %v996 = vunpack.c.l.b16 %v722
      %v997 = vunpack.c.h.b16 %v722
      %v998 = vunpack.c.l.b16 %v723
      %v999 = vunpack.c.h.b16 %v723
      %v1000 = vunpack.c.l.b16 %v724
      %v1001 = vunpack.c.h.b16 %v724
      %v1002 = vunpack.c.l.b16 %v725
      %v1003 = vunpack.c.h.b16 %v725
      %v1004 = vunpack.c.l.b16 %v726
      %v1005 = vunpack.c.h.b16 %v726
      %v1006 = vunpack.c.l.b16 %v727
      %v1007 = vunpack.c.h.b16 %v727
      %v1008 = vunpack.c.l.b16 %v728
      %v1009 = vunpack.c.h.b16 %v728
      %v1010 = vunpack.c.l.b16 %v729
      %v1011 = vunpack.c.h.b16 %v729
      %v1012 = vunpack.c.l.b16 %v730
      %v1013 = vunpack.c.h.b16 %v730
      %v1014 = vunpack.c.l.b16 %v731
      %v1015 = vunpack.c.h.b16 %v731
      %v1016 = vunpack.c.l.b16 %v732
      %v1017 = vunpack.c.h.b16 %v732
      %v1018 = vunpack.c.l.b16 %v733
      %v1019 = vunpack.c.h.b16 %v733
      %v1020 = vunpack.c.l.b16 %v734
      %v1021 = vunpack.c.h.b16 %v734
      %v1022 = vunpack.c.l.b16 %v735
      %v1023 = vunpack.c.h.b16 %v735
      %v1024 = vunpack.c.l.b16 %v736
      %v1025 = vunpack.c.h.b16 %v736
      %v1026 = vunpack.c.l.b16 %v737
      %v1027 = vunpack.c.h.b16 %v737
      %v1028 = vunpack.c.l.b16 %v738
      %v1029 = vunpack.c.h.b16 %v738
      %v1030 = vunpack.c.l.b16 %v739
      %v1031 = vunpack.c.h.b16 %v739
      %v1032 = vunpack.c.l.b16 %v740
      %v1033 = vunpack.c.h.b16 %v740
      %v1034 = vunpack.c.l.b16 %v741
      %v1035 = vunpack.c.h.b16 %v741
      %v1036 = vunpack.c.l.b16 %v742
      %v1037 = vunpack.c.h.b16 %v742
      %v1038 = vpack.c.b16 %v852, %v846
      %v1039 = vpack.c.b16 %v853, %v847
      %v1040 = vpack.c.b16 %v854, %v848
      %v1041 = vpack.c.b16 %v855, %v849
      %v1042 = vpack.c.b16 %v856, %v850
      %v1043 = vpack.c.b16 %v857, %v851
      %v1044 = vpack.c.b16 %v864, %v858
      %v1045 = vpack.c.b16 %v865, %v859
      %v1046 = vpack.c.b16 %v866, %v860
      %v1047 = vpack.c.b16 %v867, %v861
      %v1048 = vpack.c.b16 %v868, %v862
      %v1049 = vpack.c.b16 %v869, %v863
      %v1050 = vpack.c.b16 %v876, %v870
      %v1051 = vpack.c.b16 %v877, %v871
      %v1052 = vpack.c.b16 %v878, %v872
      %v1053 = vpack.c.b16 %v879, %v873
      %v1054 = vpack.c.b16 %v880, %v874
      %v1055 = vpack.c.b16 %v881, %v875
      %v1056 = vpack.c.b16 %v888, %v882
      %v1057 = vpack.c.b16 %v889, %v883
      %v1058 = vpack.c.b16 %v890, %v884
      %v1059 = vpack.c.b16 %v891, %v885
      %v1060 = vpack.c.b16 %v892, %v886
      %v1061 = vpack.c.b16 %v893, %v887
      %v1062 = vpack.c.b16 %v900, %v894
      %v1063 = vpack.c.b16 %v901, %v895
      %v1064 = vpack.c.b16 %v902, %v896
      %v1065 = vpack.c.b16 %v903, %v897
      %v1066 = vpack.c.b16 %v904, %v898
      %v1067 = vpack.c.b16 %v905, %v899
      %v1068 = vpack.c.b16 %v912, %v906
      %v1069 = vpack.c.b16 %v913, %v907
      %v1070 = vpack.c.b16 %v914, %v908
      %v1071 = vpack.c.b16 %v915, %v909
      %v1072 = vpack.c.b16 %v916, %v910
      %v1073 = vpack.c.b16 %v917, %v911
      %v1074 = vpack.c.b16 %v924, %v918
      %v1075 = vpack.c.b16 %v925, %v919
      %v1076 = vpack.c.b16 %v926, %v920
      %v1077 = vpack.c.b16 %v927, %v921
      %v1078 = vpack.c.b16 %v928, %v922
      %v1079 = vpack.c.b16 %v929, %v923
      %v1080 = vpack.c.b16 %v936, %v930
      %v1081 = vpack.c.b16 %v937, %v931
      %v1082 = vpack.c.b16 %v938, %v932
      %v1083 = vpack.c.b16 %v939, %v933
      %v1084 = vpack.c.b16 %v940, %v934
      %v1085 = vpack.c.b16 %v941, %v935
      %v1086 = vpack.c.b16 %v948, %v942
      %v1087 = vpack.c.b16 %v949, %v943
      %v1088 = vpack.c.b16 %v950, %v944
      %v1089 = vpack.c.b16 %v951, %v945
      %v1090 = vpack.c.b16 %v952, %v946
      %v1091 = vpack.c.b16 %v953, %v947
      %v1092 = vpack.c.b16 %v960, %v954
      %v1093 = vpack.c.b16 %v961, %v955
      %v1094 = vpack.c.b16 %v962, %v956
      %v1095 = vpack.c.b16 %v963, %v957
      %v1096 = vpack.c.b16 %v964, %v958
      %v1097 = vpack.c.b16 %v965, %v959
      %v1098 = vpack.c.b16 %v972, %v966
      %v1099 = vpack.c.b16 %v973, %v967
      %v1100 = vpack.c.b16 %v974, %v968
      %v1101 = vpack.c.b16 %v975, %v969
      %v1102 = vpack.c.b16 %v976, %v970
      %v1103 = vpack.c.b16 %v977, %v971
      %v1104 = vpack.c.b16 %v984, %v978
      %v1105 = vpack.c.b16 %v985, %v979
      %v1106 = vpack.c.b16 %v986, %v980
      %v1107 = vpack.c.b16 %v987, %v981
      %v1108 = vpack.c.b16 %v988, %v982
      %v1109 = vpack.c.b16 %v989, %v983
      %v1110 = vpack.c.b16 %v996, %v990
      %v1111 = vpack.c.b16 %v997, %v991
      %v1112 = vpack.c.b16 %v998, %v992
      %v1113 = vpack.c.b16 %v999, %v993
      %v1114 = vpack.c.b16 %v1000, %v994
      %v1115 = vpack.c.b16 %v1001, %v995
      %v1116 = vpack.c.b16 %v1008, %v1002
      %v1117 = vpack.c.b16 %v1009, %v1003
      %v1118 = vpack.c.b16 %v1010, %v1004
      %v1119 = vpack.c.b16 %v1011, %v1005
      %v1120 = vpack.c.b16 %v1012, %v1006
      %v1121 = vpack.c.b16 %v1013, %v1007
      %v1122 = vpack.c.b16 %v1020, %v1014
      %v1123 = vpack.c.b16 %v1021, %v1015
      %v1124 = vpack.c.b16 %v1022, %v1016
      %v1125 = vpack.c.b16 %v1023, %v1017
      %v1126 = vpack.c.b16 %v1024, %v1018
      %v1127 = vpack.c.b16 %v1025, %v1019
      %v1128 = vpack.c.b16 %v1032, %v1026
      %v1129 = vpack.c.b16 %v1033, %v1027
      %v1130 = vpack.c.b16 %v1034, %v1028
      %v1131 = vpack.c.b16 %v1035, %v1029
      %v1132 = vpack.c.b16 %v1036, %v1030
      %v1133 = vpack.c.b16 %v1037, %v1031
      %1230 = vmatpush.bf16.msra.mxu0 %v1080
      %1231 = vmatpush.bf16.msra.mxu0 %v1074
      %1232 = vmatpush.bf16.msra.mxu0 %v1068
      %1233 = vmatpush.bf16.msra.mxu0 %v1062
      %1234 = vmatpush.bf16.msra.mxu0 %v1056
      %1235 = vmatpush.bf16.msra.mxu0 %v1050
      %1236 = vmatpush.bf16.msra.mxu0 %v1044
      %1237 = vmatpush.bf16.msra.mxu0 %v1038
      %1238 = vmatmul.bf16.gmra.mxu0 %v746
      %v1239 = vpop.f32.mrf.mxu0
      %v1240 = vadd.f32 0.0, %v1239
      %v1241 = vpop.f32.mrf.mxu0
      %1242 = vdwg.mxu0
      %1243 = vmatpush.bf16.msra.mxu0 %v1128
      %1244 = vmatpush.bf16.msra.mxu0 %v1122
      %1245 = vmatpush.bf16.msra.mxu0 %v1116
      %1246 = vmatpush.bf16.msra.mxu0 %v1110
      %1247 = vmatpush.bf16.msra.mxu0 %v1104
      %1248 = vmatpush.bf16.msra.mxu0 %v1098
      %1249 = vmatpush.bf16.msra.mxu0 %v1092
      %1250 = vmatpush.bf16.msra.mxu0 %v1086
      %1251 = vmatmul.bf16.gmra.mxu0 %v747
      %v1252 = vpop.f32.mrf.mxu0
      %v1253 = vadd.f32 %v1240, %v1252
      %v1254 = vpop.f32.mrf.mxu0
      %1255 = vdwg.mxu0
      %1256 = vmatpush.bf16.msra.mxu0 %v1081
      %1257 = vmatpush.bf16.msra.mxu0 %v1075
      %1258 = vmatpush.bf16.msra.mxu0 %v1069
      %1259 = vmatpush.bf16.msra.mxu0 %v1063
      %1260 = vmatpush.bf16.msra.mxu0 %v1057
      %1261 = vmatpush.bf16.msra.mxu0 %v1051
      %1262 = vmatpush.bf16.msra.mxu0 %v1045
      %1263 = vmatpush.bf16.msra.mxu0 %v1039
      %1264 = vmatmul.bf16.gmra.mxu0 %v746
      %v1265 = vpop.f32.mrf.mxu0
      %v1266 = vadd.f32 0.0, %v1265
      %v1267 = vpop.f32.mrf.mxu0
      %1268 = vdwg.mxu0
      %1269 = vmatpush.bf16.msra.mxu0 %v1129
      %1270 = vmatpush.bf16.msra.mxu0 %v1123
      %1271 = vmatpush.bf16.msra.mxu0 %v1117
      %1272 = vmatpush.bf16.msra.mxu0 %v1111
      %1273 = vmatpush.bf16.msra.mxu0 %v1105
      %1274 = vmatpush.bf16.msra.mxu0 %v1099
      %1275 = vmatpush.bf16.msra.mxu0 %v1093
      %1276 = vmatpush.bf16.msra.mxu0 %v1087
      %1277 = vmatmul.bf16.gmra.mxu0 %v747
      %v1278 = vpop.f32.mrf.mxu0
      %v1279 = vadd.f32 %v1266, %v1278
      %v1280 = vpop.f32.mrf.mxu0
      %1281 = vdwg.mxu0
      %1282 = vmatpush.bf16.msra.mxu0 %v1082
      %1283 = vmatpush.bf16.msra.mxu0 %v1076
      %1284 = vmatpush.bf16.msra.mxu0 %v1070
      %1285 = vmatpush.bf16.msra.mxu0 %v1064
      %1286 = vmatpush.bf16.msra.mxu0 %v1058
      %1287 = vmatpush.bf16.msra.mxu0 %v1052
      %1288 = vmatpush.bf16.msra.mxu0 %v1046
      %1289 = vmatpush.bf16.msra.mxu0 %v1040
      %1290 = vmatmul.bf16.gmra.mxu0 %v746
      %v1291 = vpop.f32.mrf.mxu0
      %v1292 = vadd.f32 0.0, %v1291
      %v1293 = vpop.f32.mrf.mxu0
      %1294 = vdwg.mxu0
      %1295 = vmatpush.bf16.msra.mxu0 %v1130
      %1296 = vmatpush.bf16.msra.mxu0 %v1124
      %1297 = vmatpush.bf16.msra.mxu0 %v1118
      %1298 = vmatpush.bf16.msra.mxu0 %v1112
      %1299 = vmatpush.bf16.msra.mxu0 %v1106
      %1300 = vmatpush.bf16.msra.mxu0 %v1100
      %1301 = vmatpush.bf16.msra.mxu0 %v1094
      %1302 = vmatpush.bf16.msra.mxu0 %v1088
      %1303 = vmatmul.bf16.gmra.mxu0 %v747
      %v1304 = vpop.f32.mrf.mxu0
      %v1305 = vadd.f32 %v1292, %v1304
      %v1306 = vpop.f32.mrf.mxu0
      %1307 = vdwg.mxu0
      %1308 = vmatpush.bf16.msra.mxu0 %v1083
      %1309 = vmatpush.bf16.msra.mxu0 %v1077
      %1310 = vmatpush.bf16.msra.mxu0 %v1071
      %1311 = vmatpush.bf16.msra.mxu0 %v1065
      %1312 = vmatpush.bf16.msra.mxu0 %v1059
      %1313 = vmatpush.bf16.msra.mxu0 %v1053
      %1314 = vmatpush.bf16.msra.mxu0 %v1047
      %1315 = vmatpush.bf16.msra.mxu0 %v1041
      %1316 = vmatmul.bf16.gmra.mxu0 %v746
      %v1317 = vpop.f32.mrf.mxu0
      %v1318 = vadd.f32 0.0, %v1317
      %v1319 = vpop.f32.mrf.mxu0
      %1320 = vdwg.mxu0
      %1321 = vmatpush.bf16.msra.mxu0 %v1131
      %1322 = vmatpush.bf16.msra.mxu0 %v1125
      %1323 = vmatpush.bf16.msra.mxu0 %v1119
      %1324 = vmatpush.bf16.msra.mxu0 %v1113
      %1325 = vmatpush.bf16.msra.mxu0 %v1107
      %1326 = vmatpush.bf16.msra.mxu0 %v1101
      %1327 = vmatpush.bf16.msra.mxu0 %v1095
      %1328 = vmatpush.bf16.msra.mxu0 %v1089
      %1329 = vmatmul.bf16.gmra.mxu0 %v747
      %v1330 = vpop.f32.mrf.mxu0
      %v1331 = vadd.f32 %v1318, %v1330
      %v1332 = vpop.f32.mrf.mxu0
      %1333 = vdwg.mxu0
      %1334 = vmatpush.bf16.msra.mxu0 %v1084
      %1335 = vmatpush.bf16.msra.mxu0 %v1078
      %1336 = vmatpush.bf16.msra.mxu0 %v1072
      %1337 = vmatpush.bf16.msra.mxu0 %v1066
      %1338 = vmatpush.bf16.msra.mxu0 %v1060
      %1339 = vmatpush.bf16.msra.mxu0 %v1054
      %1340 = vmatpush.bf16.msra.mxu0 %v1048
      %1341 = vmatpush.bf16.msra.mxu0 %v1042
      %1342 = vmatmul.bf16.gmra.mxu0 %v746
      %v1343 = vpop.f32.mrf.mxu0
      %v1344 = vadd.f32 0.0, %v1343
      %v1345 = vpop.f32.mrf.mxu0
      %1346 = vdwg.mxu0
      %1347 = vmatpush.bf16.msra.mxu0 %v1132
      %1348 = vmatpush.bf16.msra.mxu0 %v1126
      %1349 = vmatpush.bf16.msra.mxu0 %v1120
      %1350 = vmatpush.bf16.msra.mxu0 %v1114
      %1351 = vmatpush.bf16.msra.mxu0 %v1108
      %1352 = vmatpush.bf16.msra.mxu0 %v1102
      %1353 = vmatpush.bf16.msra.mxu0 %v1096
      %1354 = vmatpush.bf16.msra.mxu0 %v1090
      %1355 = vmatmul.bf16.gmra.mxu0 %v747
      %v1356 = vpop.f32.mrf.mxu0
      %v1357 = vadd.f32 %v1344, %v1356
      %v1358 = vpop.f32.mrf.mxu0
      %1359 = vdwg.mxu0
      %1360 = vmatpush.bf16.msra.mxu0 %v1085
      %1361 = vmatpush.bf16.msra.mxu0 %v1079
      %1362 = vmatpush.bf16.msra.mxu0 %v1073
      %1363 = vmatpush.bf16.msra.mxu0 %v1067
      %1364 = vmatpush.bf16.msra.mxu0 %v1061
      %1365 = vmatpush.bf16.msra.mxu0 %v1055
      %1366 = vmatpush.bf16.msra.mxu0 %v1049
      %1367 = vmatpush.bf16.msra.mxu0 %v1043
      %1368 = vmatmul.bf16.gmra.mxu0 %v746
      %v1369 = vpop.f32.mrf.mxu0
      %v1370 = vadd.f32 0.0, %v1369
      %v1371 = vpop.f32.mrf.mxu0
      %1372 = vdwg.mxu0
      %1373 = vmatpush.bf16.msra.mxu0 %v1133
      %1374 = vmatpush.bf16.msra.mxu0 %v1127
      %1375 = vmatpush.bf16.msra.mxu0 %v1121
      %1376 = vmatpush.bf16.msra.mxu0 %v1115
      %1377 = vmatpush.bf16.msra.mxu0 %v1109
      %1378 = vmatpush.bf16.msra.mxu0 %v1103
      %1379 = vmatpush.bf16.msra.mxu0 %v1097
      %1380 = vmatpush.bf16.msra.mxu0 %v1091
      %1381 = vmatmul.bf16.gmra.mxu0 %v747
      %v1382 = vpop.f32.mrf.mxu0
      %v1383 = vadd.f32 %v1370, %v1382
      %v1384 = vpop.f32.mrf.mxu0
      %1385 = vdwg.mxu0
      %s1386 = smul.u32 %s639, 8
      %s1387 = sshra.s32 %s1386, 3
      %s1388 = sand.u32 %s1386, 7
      %s1389 = smul.u32 %s1387, 6
      %s1390 = smul.addr %s1389, 8
      %s1391 = scalar_lea.vmem [#allocation2], %s1390
      %v1392 = vld [vmem:[%s1391] sm:$0xff]
      %v1393 = vld [vmem:[%s1391 + $0x8] sm:$0xff]
      %v1394 = vld [vmem:[%s1391 + $0x10] sm:$0xff]
      %v1395 = vld [vmem:[%s1391 + $0x18] sm:$0xff]
      %v1396 = vld [vmem:[%s1391 + $0x20] sm:$0xff]
      %v1397 = vld [vmem:[%s1391 + $0x28] sm:$0xff]
      %v1398 = vadd.f32 %v1392, %v1253
      %v1399 = vadd.f32 %v1393, %v1279
      %v1400 = vxor.u32 %v1398, 2147483648
      %v1401 = vxor.u32 %v1399, 2147483648
      %v1402 = vmul.f32 %v1400, 1.442695
      %v1403 = vpow.pop %v1402
      %v1404 = vmul.f32 %v1401, 1.442695
      %v1405 = vpow.pop %v1404
      %v1406 = vadd.f32 %v1403, 1.0
      %v1407 = vadd.f32 %v1405, 1.0
      %v1408 = vrcp.pop %v1406
      %v1409 = vmul.f32 %v1406, %v1408
      %v1410 = vsub.f32 1.0, %v1409
      %v1411 = vmul.f32 %v1408, %v1410
      %v1412 = vadd.f32 %v1408, %v1411
      %vm1413 = vweird.f32 %v1406
      %vm1414 = vweird.f32 %v1408
      %vm1415 = vmor %vm1413, %vm1414
      %v1416 = vsel %vm1415, %v1408, %v1412
      %v1417 = vand.u32 2147483647, %v1406
      %vm1418 = vcmp.eq.f32.partialorder %v1417, 8.507059e+37
      %v1419 = vand.u32 %v1406, 2147483648
      %v1420 = vor.u32 1.1754944e-38, %v1419
      %v1421 = vsel %vm1418, %v1420, %v1416
      %v1422 = vmul.f32 1.0, %v1421
      %v1423 = vrcp.pop %v1407
      %v1424 = vmul.f32 %v1407, %v1423
      %v1425 = vsub.f32 1.0, %v1424
      %v1426 = vmul.f32 %v1423, %v1425
      %v1427 = vadd.f32 %v1423, %v1426
      %vm1428 = vweird.f32 %v1407
      %vm1429 = vweird.f32 %v1423
      %vm1430 = vmor %vm1428, %vm1429
      %v1431 = vsel %vm1430, %v1423, %v1427
      %v1432 = vand.u32 2147483647, %v1407
      %vm1433 = vcmp.eq.f32.partialorder %v1432, 8.507059e+37
      %v1434 = vand.u32 %v1407, 2147483648
      %v1435 = vor.u32 1.1754944e-38, %v1434
      %v1436 = vsel %vm1433, %v1435, %v1431
      %v1437 = vmul.f32 1.0, %v1436
      %v1438 = vadd.f32 %v1394, %v1305
      %v1439 = vadd.f32 %v1395, %v1331
      %v1440 = vxor.u32 %v1438, 2147483648
      %v1441 = vxor.u32 %v1439, 2147483648
      %v1442 = vmul.f32 %v1440, 1.442695
      %v1443 = vpow.pop %v1442
      %v1444 = vmul.f32 %v1441, 1.442695
      %v1445 = vpow.pop %v1444
      %v1446 = vadd.f32 %v1443, 1.0
      %v1447 = vadd.f32 %v1445, 1.0
      %v1448 = vrcp.pop %v1446
      %v1449 = vmul.f32 %v1446, %v1448
      %v1450 = vsub.f32 1.0, %v1449
      %v1451 = vmul.f32 %v1448, %v1450
      %v1452 = vadd.f32 %v1448, %v1451
      %vm1453 = vweird.f32 %v1446
      %vm1454 = vweird.f32 %v1448
      %vm1455 = vmor %vm1453, %vm1454
      %v1456 = vsel %vm1455, %v1448, %v1452
      %v1457 = vand.u32 2147483647, %v1446
      %vm1458 = vcmp.eq.f32.partialorder %v1457, 8.507059e+37
      %v1459 = vand.u32 %v1446, 2147483648
      %v1460 = vor.u32 1.1754944e-38, %v1459
      %v1461 = vsel %vm1458, %v1460, %v1456
      %v1462 = vmul.f32 1.0, %v1461
      %v1463 = vrcp.pop %v1447
      %v1464 = vmul.f32 %v1447, %v1463
      %v1465 = vsub.f32 1.0, %v1464
      %v1466 = vmul.f32 %v1463, %v1465
      %v1467 = vadd.f32 %v1463, %v1466
      %vm1468 = vweird.f32 %v1447
      %vm1469 = vweird.f32 %v1463
      %vm1470 = vmor %vm1468, %vm1469
      %v1471 = vsel %vm1470, %v1463, %v1467
      %v1472 = vand.u32 2147483647, %v1447
      %vm1473 = vcmp.eq.f32.partialorder %v1472, 8.507059e+37
      %v1474 = vand.u32 %v1447, 2147483648
      %v1475 = vor.u32 1.1754944e-38, %v1474
      %v1476 = vsel %vm1473, %v1475, %v1471
      %v1477 = vmul.f32 1.0, %v1476
      %v1478 = vadd.f32 %v1357, %v633
      %v1479 = vadd.f32 %v1383, %v634
      %v1480 = vmul.f32 %v1422, %v1478
      %v1481 = vmul.f32 %v1437, %v1479
      %v1482 = vadd.f32 %v1396, %v1480
      %v1483 = vadd.f32 %v1397, %v1481
      %v1484 = vtanh.pop %v1482
      %v1485 = vtanh.pop %v1483
      %v1486 = vsub.f32 1.0, %v1462
      %v1487 = vsub.f32 1.0, %v1477
      %v1488 = vmul.f32 %v1486, %v1484
      %v1489 = vmul.f32 %v1487, %v1485
      %v1490 = vmul.f32 %v1462, %v644
      %v1491 = vmul.f32 %v1477, %v645
      %v1492 = vadd.f32 %v1488, %v1490
      %v1493 = vadd.f32 %v1489, %v1491
      %v1494 = vstv %s639
      %vm1495 = vcmp.lt.s32.totalorder %v1494, %v630
      %v1496 = vsel %vm1495, 1, 0
      %1497 = vset.pattern.permute.xlu0 0
      %1498 = vperm.xlu0 %1497, %v1496
      %v1499 = vpop.permute.xlu0 %1498
      %vm1500 = vcmp.eq.s32.totalorder %v1499, 1
      %v1501 = vsel %vm1500, %v1492, %v644
      %v1502 = vsel %vm1500, %v1493, %v645
      %v1503 = vpack.c.bf16 %v1502, %v1501
    $region42: #{tpu_custom_call.1} parent=1 // loop_footer
      %s641 = sadd.s32 %s639, 1
    $region43: #{tpu_custom_call.1} parent=1 // loop_footer_branch
      %638 = sbr.rel target = $region39
    $region44: #{tpu_custom_call.1} parent=1 // loop_exit
      _
    %1504 = vst [vmem:[#allocation11] sm:$0xff] %v644
    %1505 = vst [vmem:[#allocation11 + $0x8] sm:$0xff] %v645
    // Predicated region
    $region45: #{tpu_custom_call.1} parent=1 // pred_check
      _
    $region46: #{tpu_custom_call.1} parent=1 // pred_check_branch
      %1507 = sbr.rel (0) target = $region48
    $region47: #{tpu_custom_call.1} parent=1 // pred_region
      %1509 = vsyncadd [#allocation7], 0
      %s1511 = sshll.u32 [#allocation11], 4
      %s1512 = int_to_ptr.vmem [resolvable:$true] %s1511
      %s1513 = sshll.u32 %s7, 4
      %s1514 = int_to_ptr.hbm [resolvable:$true] %s1513
      %1516 = dma.vmem_to_hbm [thread:$0]  %s1512, 256, %s1514, [#allocation7]
    $region48: #{tpu_custom_call.1} parent=1 // pred_fallthru
      _
    // Predicated region
    $region49: #{tpu_custom_call.1} parent=1 // pred_check
      _
    $region50: #{tpu_custom_call.1} parent=1 // pred_check_branch
      %1518 = sbr.rel (0) target = $region52
    $region51: #{tpu_custom_call.1} parent=1 // pred_region
      %1520 = dma.done [#allocation7], 256
    $region52: #{tpu_custom_call.1} parent=1 // pred_fallthru
      _
    %1521 = vsyncpa [#allocation6], 1
    %1522 = vsyncpa [#allocation9], 1
    %1523 = vsyncpa [#allocation7], 1

</llo_original>
